<compile_context>
chip_gen: v7x
topology: tpu7x:2x2x1
jax: 0.10.0
libtpu: 0.0.40
codegen_flags: <defaults>
</compile_context>

<pallas_src>
import functools

import jax
import jax.numpy as jnp
from jax.experimental import pallas as pl
from jax.experimental.pallas import tpu as pltpu


def _softplus(x):
    # Numerically-stable softplus; matches torch.nn.Softplus(beta=1, threshold=20).
    return jnp.maximum(x, 0.0) + jnp.log1p(jnp.exp(-jnp.abs(x)))


def _round_up(x, k):
    return ((x + k - 1) // k) * k


# --------------------------------------------------------------------------------------
# Kernel 1: recompute z' = self_proj_c + gathered (shifted by c) and emit BN1 partial
#           sums / sums-of-squares per row-tile (no big HBM intermediate).
# --------------------------------------------------------------------------------------
def _bn1_partials_kernel(self_ref, gath_ref, stats_ref, *, n_valid):
    i = pl.program_id(0)
    tn, m, f = gath_ref.shape

    sp = self_ref[...]                                   # (tn, f), mean-shifted
    zsum = jnp.zeros((tn, f), jnp.float32)
    zsq = jnp.zeros((tn, f), jnp.float32)
    # Chunk the neighbor axis in sublane-sized groups: bounded (tn, <=8, f) temps,
    # dense sublane loads from the (tn, m, f) block.
    for m0 in range(0, m, 8):
        mc = min(8, m - m0)
        blk = gath_ref[:, m0:m0 + mc, :]                 # (tn, mc, f)
        z = blk + sp[:, None, :]
        zsum = zsum + jnp.sum(z, axis=1)
        zsq = zsq + jnp.sum(z * z, axis=1)

    # mask padded rows out of the statistics
    row = i * tn + jax.lax.broadcasted_iota(jnp.int32, (tn, f), 0)
    mask = (row < n_valid).astype(jnp.float32)           # (tn, f)
    s1 = jnp.sum(zsum * mask, axis=0, keepdims=True)     # (1, f)
    s2 = jnp.sum(zsq * mask, axis=0, keepdims=True)      # (1, f)
    stats_ref[...] = jnp.concatenate([s1, s2], axis=0)[None]   # (1, 2, f)


# --------------------------------------------------------------------------------------
# Kernel 2: recompute z', apply BN1 (folded scale/shift), sigmoid/softplus gate,
#           sum over neighbors -> nbr_sumed tile, and emit BN2 partials.
# --------------------------------------------------------------------------------------
def _gate_reduce_kernel(self_ref, gath_ref, bn1_ref, summed_ref, part_ref, *, n_valid):
    i = pl.program_id(0)
    tn, m, f = gath_ref.shape
    a = f // 2

    sp = self_ref[...]                                   # (tn, f), mean-shifted
    scale = bn1_ref[0:1, :]                              # (1, f)
    shift = bn1_ref[1:2, :]                              # (1, f)

    summed = jnp.zeros((tn, a), jnp.float32)
    for m0 in range(0, m, 8):
        mc = min(8, m - m0)
        blk = gath_ref[:, m0:m0 + mc, :]                 # (tn, mc, f)
        z = blk + sp[:, None, :]
        h = z * scale + shift                            # BN1 folded into the shifted z
        nbr_filter = jax.nn.sigmoid(h[..., :a])
        nbr_core = _softplus(h[..., a:])
        summed = summed + jnp.sum(nbr_filter * nbr_core, axis=1)
    summed_ref[...] = summed

    row = i * tn + jax.lax.broadcasted_iota(jnp.int32, (tn, a), 0)
    mask = (row < n_valid).astype(jnp.float32)
    sm = summed * mask
    p1 = jnp.sum(sm, axis=0, keepdims=True)              # (1, a)
    p2 = jnp.sum(sm * summed, axis=0, keepdims=True)     # (1, a)
    part_ref[...] = jnp.concatenate([p1, p2], axis=0)[None]    # (1, 2, a)


# --------------------------------------------------------------------------------------
# Tiling / VMEM budgeting (generation-aware).
# --------------------------------------------------------------------------------------
def _vmem_limit_bytes():
    try:
        cap = int(pltpu.get_tpu_info().vmem_capacity_bytes)
    except Exception:
        cap = 64 * 1024 * 1024          # conservative fallback (safe on all gens)
    # ~78% of physical per core, capped at 100 MiB (v5e/v6e -> ~100 MiB, v7x -> ~50 MiB)
    return min(int(cap * 0.78), 100 * 1024 * 1024)


def _pick_tile_n(n, m, a, budget_bytes):
    """Largest row tile (multiple of 8, <=1024) whose working set fits the budget,
    counting lane(128)/sublane(8) padding, double-buffered streamed blocks and the
    bounded chunk temporaries of the in-kernel M loop."""
    f_pad = _round_up(2 * a, 128)
    a_pad = _round_up(a, 128)
    m_pad = _round_up(m, 8)
    bytes_per_row = 4 * (2 * m_pad * f_pad       # gathered input block, double-buffered
                         + 2 * f_pad             # self_proj input block, double-buffered
                         + 2 * a_pad             # summed output block, double-buffered
                         + 5 * 8 * f_pad         # live (tn, <=8, F) chunk temporaries
                         + 2 * f_pad)            # (tn, F) accumulators
    t = max(8, budget_bytes // bytes_per_row)
    t = min((int(t) // 8) * 8, 1024)
    n8 = _round_up(n, 8)
    t = min(t, n8)
    # keep grid_n >= 2 so "parallel" can shard across 2 TensorCores on v7x
    if n8 > 8:
        t = min(t, max(8, _round_up(-(-n8 // 2), 8)))
    return max(8, t)


# --------------------------------------------------------------------------------------
# Forward wrapper.
# --------------------------------------------------------------------------------------
def conv_layer_forward(atom_in_fea, nbr_fea, nbr_fea_idx, params, *, eps=1e-5,
                       tile_n=None):
    n, a = atom_in_fea.shape
    _, m, b = nbr_fea.shape
    f = 2 * a

    vmem_limit = _vmem_limit_bytes()
    if tile_n is None:
        tile_n = _pick_tile_n(n, m, a, budget_bytes=int(vmem_limit * 0.45))
    grid_n = pl.cdiv(n, tile_n)
    n_pad = grid_n * tile_n
    pad = n_pad - n
    grid = (grid_n,)

    atom = atom_in_fea.astype(jnp.float32)
    bond = nbr_fea.astype(jnp.float32)
    idx = nbr_fea_idx.astype(jnp.int32)

    # fc_full weight is torch-layout (2A, 2A+B); transpose and split by concat blocks.
    wt = params["fc_w"].T                               # (2A+B, 2A)
    ws, wn, wb = wt[:a], wt[a:2 * a], wt[2 * a:]

    # ---- XLA glue: per-atom projections + gather, bond projection folded in ---------
    self_proj = atom @ ws + params["fc_b"][None, :]     # (n, 2A), bias folded
    c = jnp.mean(self_proj, axis=0)                     # per-feature shift for stable var
    self_c = jnp.pad(self_proj - c[None, :], ((0, pad), (0, 0)))
    nbr_proj = atom @ wn                                # (n, 2A)
    gathered = jnp.take(nbr_proj, idx, axis=0) + jnp.einsum('nmb,bf->nmf', bond, wb)
    gathered = jnp.pad(gathered, ((0, pad), (0, 0), (0, 0)))   # (n_pad, M, 2A)

    cparams = pltpu.CompilerParams(dimension_semantics=("parallel",),
                                   vmem_limit_bytes=vmem_limit)

    row_f_spec = pl.BlockSpec((tile_n, f), lambda i: (i, 0))
    row_a_spec = pl.BlockSpec((tile_n, a), lambda i: (i, 0))
    gath_spec = pl.BlockSpec((tile_n, m, f), lambda i: (i, 0, 0))
    bn1_spec = pl.BlockSpec((2, f), lambda i: (0, 0))
    statf_spec = pl.BlockSpec((1, 2, f), lambda i: (i, 0, 0))
    stata_spec = pl.BlockSpec((1, 2, a), lambda i: (i, 0, 0))

    # ---- kernel 1: BN1 partial statistics (no (N,M,2A) HBM intermediate) ------------
    stats1 = pl.pallas_call(
        functools.partial(_bn1_partials_kernel, n_valid=n),
        out_shape=jax.ShapeDtypeStruct((grid_n, 2, f), jnp.float32),
        grid=grid,
        in_specs=[row_f_spec, gath_spec],
        out_specs=statf_spec,
        compiler_params=cparams,
    )(self_c, gathered)

    cnt1 = float(n * m)
    s1 = jnp.sum(stats1[:, 0, :], axis=0)
    s2 = jnp.sum(stats1[:, 1, :], axis=0)
    mean_c = s1 / cnt1                                   # mean of (z - c)
    var1 = jnp.maximum(s2 / cnt1 - mean_c * mean_c, 0.0)  # biased, torch training-mode
    inv1 = params["bn1_gamma"] / jnp.sqrt(var1 + eps)
    # h = (z - mean1)*inv1 + beta1 = (z - c)*inv1 + (beta1 - mean_c*inv1)
    bn1_packed = jnp.stack([inv1, params["bn1_beta"] - mean_c * inv1], axis=0)  # (2, F)

    # ---- kernel 2: recompute z, BN1 + gate + neighbor-sum, BN2 partials --------------
    nbr_sumed, stats2 = pl.pallas_call(
        functools.partial(_gate_reduce_kernel, n_valid=n),
        out_shape=(jax.ShapeDtypeStruct((n_pad, a), jnp.float32),
                   jax.ShapeDtypeStruct((grid_n, 2, a), jnp.float32)),
        grid=grid,
        in_specs=[row_f_spec, gath_spec, bn1_spec],
        out_specs=(row_a_spec, stata_spec),
        compiler_params=cparams,
    )(self_c, gathered, bn1_packed)

    cnt2 = float(n)
    q1 = jnp.sum(stats2[:, 0, :], axis=0)
    q2 = jnp.sum(stats2[:, 1, :], axis=0)
    mean2 = q1 / cnt2
    var2 = jnp.maximum(q2 / cnt2 - mean2 * mean2, 0.0)
    inv2 = params["bn2_gamma"] / jnp.sqrt(var2 + eps)
    shift2 = params["bn2_beta"] - mean2 * inv2

    # ---- BN2 + residual + softplus on (N, A): tiny, left to XLA fusion ---------------
    return _softplus(atom + nbr_sumed[:n] * inv2[None, :] + shift2[None, :])


def conv_layer_reference(atom_in_fea, nbr_fea, nbr_fea_idx, params, eps=1e-5):
    """Pure-JAX reference mirroring the PyTorch forward (training-mode BN)."""
    n, m = nbr_fea_idx.shape
    a = atom_in_fea.shape[1]
    atom_nbr = atom_in_fea[nbr_fea_idx]                             # (N, M, A)
    self_exp = jnp.broadcast_to(atom_in_fea[:, None, :], (n, m, a))
    total = jnp.concatenate([self_exp, atom_nbr, nbr_fea], axis=2)
    z = total @ params["fc_w"].T + params["fc_b"]
    zf = z.reshape(-1, 2 * a)
    mu, var = zf.mean(0), zf.var(0)
    zn = (zf - mu) / jnp.sqrt(var + eps) * params["bn1_gamma"] + params["bn1_beta"]
    zn = zn.reshape(n, m, 2 * a)
    nf = jax.nn.sigmoid(zn[..., :a])
    nc = _softplus(zn[..., a:])
    s = jnp.sum(nf * nc, axis=1)
    mu2, var2 = s.mean(0), s.var(0)
    sn = (s - mu2) / jnp.sqrt(var2 + eps) * params["bn2_gamma"] + params["bn2_beta"]
    return _softplus(atom_in_fea + sn)


if __name__ == "__main__":
    # N atoms (not a tile multiple, exercises padding/masking), M=12 neighbors
    # (CGCNN default, not a multiple of 8 -> exercises the partial sublane chunk),
    # atom_fea_len A, nbr_fea_len B.
    N, M, A, B = 20, 12, 32, 16

    key = jax.random.PRNGKey(0)
    ka, kn, ki, kw, kb = jax.random.split(key, 5)
    atom_in = jax.random.normal(ka, (N, A), jnp.float32)
    nbr_fea = jax.random.normal(kn, (N, M, B), jnp.float32)
    nbr_idx = jax.random.randint(ki, (N, M), 0, N, dtype=jnp.int32)

    fan_in = 2 * A + B
    bound = 1.0 / (fan_in ** 0.5)
    params = {
        # nn.Linear(2A+B, 2A): weight (2A, 2A+B), bias (2A,)
        "fc_w": jax.random.uniform(kw, (2 * A, fan_in), jnp.float32, -bound, bound),
        "fc_b": jax.random.uniform(kb, (2 * A,), jnp.float32, -bound, bound),
        # BatchNorm defaults: gamma=1, beta=0
        "bn1_gamma": jnp.ones((2 * A,), jnp.float32),
        "bn1_beta": jnp.zeros((2 * A,), jnp.float32),
        "bn2_gamma": jnp.ones((A,), jnp.float32),
        "bn2_beta": jnp.zeros((A,), jnp.float32),
    }

    ref = conv_layer_reference(atom_in, nbr_fea, nbr_idx, params)

    # Forced small tile: multi-tile grid + masked remainder.
    fwd_small = jax.jit(functools.partial(conv_layer_forward, tile_n=8))
    out_small = jax.block_until_ready(fwd_small(atom_in, nbr_fea, nbr_idx, params))

    # Auto-sized tile: exercises the generation-aware VMEM budget / 2-core clamp path.
    fwd_auto = jax.jit(conv_layer_forward)
    out_auto = jax.block_until_ready(fwd_auto(atom_in, nbr_fea, nbr_idx, params))

    assert out_small.shape == (N, A) and out_auto.shape == (N, A)
    assert bool(jnp.allclose(out_small, ref, atol=1e-4, rtol=1e-4)), "mismatch (tile_n=8)"
    assert bool(jnp.allclose(out_auto, ref, atol=1e-4, rtol=1e-4)), "mismatch (auto tile)"
    print("KERNEL_OK")
</pallas_src>

<mosaic_0001>
module attributes {stable_mosaic.version = 11 : i64} {
  func.func @_bn1_partials_kernel(%arg0: i32, %arg1: memref<8x64xf32, #tpu.memory_space<vmem>>, %arg2: memref<8x12x64xf32, #tpu.memory_space<vmem>>, %arg3: memref<1x2x64xf32, #tpu.memory_space<vmem>>) attributes {dimension_semantics = [#tpu.dimension_semantics<parallel>], iteration_bounds = array<i64: 3>, scalar_prefetch = 0 : i64, scratch_operands = 0 : i64, tpu.core_type = #tpu.core_type<tc>, window_params = [{transform_indices = @transform_0, window_bounds = array<i64: 8, 64>}, {transform_indices = @transform_1, window_bounds = array<i64: 8, 12, 64>}, {transform_indices = @transform_2, window_bounds = array<i64: 1, 2, 64>}]} {
    %c0 = arith.constant 0 : index
    %c0_0 = arith.constant 0 : index
    %0 = vector.load %arg1[%c0, %c0_0] : memref<8x64xf32, #tpu.memory_space<vmem>>, vector<8x64xf32>
    %cst = arith.constant 0.000000e+00 : f32
    %1 = vector.broadcast %cst : f32 to vector<8x64xf32>
    %cst_1 = arith.constant 0.000000e+00 : f32
    %2 = vector.broadcast %cst_1 : f32 to vector<8x64xf32>
    %c0_2 = arith.constant 0 : index
    %c0_3 = arith.constant 0 : index
    %c0_4 = arith.constant 0 : index
    %3 = vector.load %arg2[%c0_2, %c0_3, %c0_4] : memref<8x12x64xf32, #tpu.memory_space<vmem>>, vector<8x8x64xf32>
    %4 = vector.shape_cast %0 : vector<8x64xf32> to vector<8x1x64xf32>
    %5 = vector.broadcast %4 : vector<8x1x64xf32> to vector<8x8x64xf32>
    %6 = arith.addf %3, %5 : vector<8x8x64xf32>
    %cst_5 = arith.constant dense<0.000000e+00> : vector<8x64xf32>
    %7 = vector.multi_reduction <add>, %6, %cst_5 [1] : vector<8x8x64xf32> to vector<8x64xf32>
    %8 = arith.addf %1, %7 : vector<8x64xf32>
    %9 = arith.mulf %6, %6 : vector<8x8x64xf32>
    %cst_6 = arith.constant dense<0.000000e+00> : vector<8x64xf32>
    %10 = vector.multi_reduction <add>, %9, %cst_6 [1] : vector<8x8x64xf32> to vector<8x64xf32>
    %11 = arith.addf %2, %10 : vector<8x64xf32>
    %c0_7 = arith.constant 0 : index
    %c8 = arith.constant 8 : index
    %c0_8 = arith.constant 0 : index
    %12 = vector.load %arg2[%c0_7, %c8, %c0_8] : memref<8x12x64xf32, #tpu.memory_space<vmem>>, vector<8x4x64xf32>
    %13 = vector.shape_cast %0 : vector<8x64xf32> to vector<8x1x64xf32>
    %14 = vector.broadcast %13 : vector<8x1x64xf32> to vector<8x4x64xf32>
    %15 = arith.addf %12, %14 : vector<8x4x64xf32>
    %cst_9 = arith.constant dense<0.000000e+00> : vector<8x64xf32>
    %16 = vector.multi_reduction <add>, %15, %cst_9 [1] : vector<8x4x64xf32> to vector<8x64xf32>
    %17 = arith.addf %8, %16 : vector<8x64xf32>
    %18 = arith.mulf %15, %15 : vector<8x4x64xf32>
    %cst_10 = arith.constant dense<0.000000e+00> : vector<8x64xf32>
    %19 = vector.multi_reduction <add>, %18, %cst_10 [1] : vector<8x4x64xf32> to vector<8x64xf32>
    %20 = arith.addf %11, %19 : vector<8x64xf32>
    %c8_i32 = arith.constant 8 : i32
    %21 = arith.muli %arg0, %c8_i32 : i32
    %22 = tpu.iota {dimensions = array<i32: 0>} : vector<8x64xi32>
    %23 = vector.broadcast %21 : i32 to vector<8x64xi32>
    %24 = arith.addi %23, %22 : vector<8x64xi32>
    %c20_i32 = arith.constant 20 : i32
    %25 = vector.broadcast %c20_i32 : i32 to vector<8x64xi32>
    %26 = arith.cmpi slt, %24, %25 : vector<8x64xi32>
    %27 = arith.extui %26 : vector<8x64xi1> to vector<8x64xi32>
    %28 = arith.sitofp %27 : vector<8x64xi32> to vector<8x64xf32>
    %29 = arith.mulf %17, %28 : vector<8x64xf32>
    %cst_11 = arith.constant dense<0.000000e+00> : vector<64xf32>
    %30 = vector.multi_reduction <add>, %29, %cst_11 [0] : vector<8x64xf32> to vector<64xf32>
    %31 = vector.shape_cast %30 : vector<64xf32> to vector<1x64xf32>
    %32 = arith.mulf %20, %28 : vector<8x64xf32>
    %cst_12 = arith.constant dense<0.000000e+00> : vector<64xf32>
    %33 = vector.multi_reduction <add>, %32, %cst_12 [0] : vector<8x64xf32> to vector<64xf32>
    %34 = vector.shape_cast %33 : vector<64xf32> to vector<1x64xf32>
    %35 = tpu.concatenate %31, %34 in 0 : vector<1x64xf32>, vector<1x64xf32> -> vector<2x64xf32>
    %36 = vector.shape_cast %35 : vector<2x64xf32> to vector<1x2x64xf32>
    %c0_13 = arith.constant 0 : index
    %c0_14 = arith.constant 0 : index
    %c0_15 = arith.constant 0 : index
    %37 = vector.load %arg3[%c0_13, %c0_14, %c0_15] : memref<1x2x64xf32, #tpu.memory_space<vmem>>, vector<1x2x64xf32>
    tpu.vector_store %arg3[%c0_13, %c0_14, %c0_15], %36 {strides = array<i32>} : memref<1x2x64xf32, #tpu.memory_space<vmem>>, vector<1x2x64xf32>,
    return
  }
  func.func @transform_0(%arg0: i32) -> (i32, i32) {
    %c0_i32 = arith.constant 0 : i32
    %c0_i32_0 = arith.constant 0 : i32
    return %arg0, %c0_i32 : i32, i32
  }
  func.func @transform_1(%arg0: i32) -> (i32, i32, i32) {
    %c0_i32 = arith.constant 0 : i32
    %c0_i32_0 = arith.constant 0 : i32
    %c0_i32_1 = arith.constant 0 : i32
    return %arg0, %c0_i32, %c0_i32_0 : i32, i32, i32
  }
  func.func @transform_2(%arg0: i32) -> (i32, i32, i32) {
    %c0_i32 = arith.constant 0 : i32
    %c0_i32_0 = arith.constant 0 : i32
    %c0_i32_1 = arith.constant 0 : i32
    return %arg0, %c0_i32, %c0_i32_0 : i32, i32, i32
  }
}

module attributes {stable_mosaic.version = 11 : i64} {
  func.func @_gate_reduce_kernel(%arg0: i32, %arg1: memref<8x64xf32, #tpu.memory_space<vmem>>, %arg2: memref<8x12x64xf32, #tpu.memory_space<vmem>>, %arg3: memref<2x64xf32, #tpu.memory_space<vmem>>, %arg4: memref<8x32xf32, #tpu.memory_space<vmem>>, %arg5: memref<1x2x32xf32, #tpu.memory_space<vmem>>) attributes {dimension_semantics = [#tpu.dimension_semantics<parallel>], iteration_bounds = array<i64: 3>, scalar_prefetch = 0 : i64, scratch_operands = 0 : i64, tpu.core_type = #tpu.core_type<tc>, window_params = [{transform_indices = @transform_0, window_bounds = array<i64: 8, 64>}, {transform_indices = @transform_1, window_bounds = array<i64: 8, 12, 64>}, {pipeline_mode = #tpu.pipeline_mode<synchronous>, transform_indices = @transform_2, window_bounds = array<i64: 2, 64>}, {transform_indices = @transform_3, window_bounds = array<i64: 8, 32>}, {transform_indices = @transform_4, window_bounds = array<i64: 1, 2, 32>}]} {
    %c0 = arith.constant 0 : index
    %c0_0 = arith.constant 0 : index
    %0 = vector.load %arg1[%c0, %c0_0] : memref<8x64xf32, #tpu.memory_space<vmem>>, vector<8x64xf32>
    %c0_1 = arith.constant 0 : index
    %c0_2 = arith.constant 0 : index
    %1 = vector.load %arg3[%c0_1, %c0_2] : memref<2x64xf32, #tpu.memory_space<vmem>>, vector<1x64xf32>
    %c1 = arith.constant 1 : index
    %c0_3 = arith.constant 0 : index
    %2 = vector.load %arg3[%c1, %c0_3] : memref<2x64xf32, #tpu.memory_space<vmem>>, vector<1x64xf32>
    %cst = arith.constant 0.000000e+00 : f32
    %3 = vector.broadcast %cst : f32 to vector<8x32xf32>
    %c0_4 = arith.constant 0 : index
    %c0_5 = arith.constant 0 : index
    %c0_6 = arith.constant 0 : index
    %4 = vector.load %arg2[%c0_4, %c0_5, %c0_6] : memref<8x12x64xf32, #tpu.memory_space<vmem>>, vector<8x8x64xf32>
    %5 = vector.shape_cast %0 : vector<8x64xf32> to vector<8x1x64xf32>
    %6 = vector.broadcast %5 : vector<8x1x64xf32> to vector<8x8x64xf32>
    %7 = arith.addf %4, %6 : vector<8x8x64xf32>
    %8 = vector.shape_cast %1 : vector<1x64xf32> to vector<1x1x64xf32>
    %9 = vector.broadcast %8 : vector<1x1x64xf32> to vector<8x8x64xf32>
    %10 = arith.mulf %7, %9 : vector<8x8x64xf32>
    %11 = vector.shape_cast %2 : vector<1x64xf32> to vector<1x1x64xf32>
    %12 = vector.broadcast %11 : vector<1x1x64xf32> to vector<8x8x64xf32>
    %13 = arith.addf %10, %12 : vector<8x8x64xf32>
    %14 = vector.extract_strided_slice %13 {offsets = [0, 0, 0], sizes = [8, 8, 32], strides = [1, 1, 1]} : vector<8x8x64xf32> to vector<8x8x32xf32>
    %15 = arith.negf %14 : vector<8x8x32xf32>
    %16 = math.exp %15 : vector<8x8x32xf32>
    %cst_7 = arith.constant 1.000000e+00 : f32
    %17 = vector.broadcast %cst_7 : f32 to vector<8x8x32xf32>
    %18 = arith.addf %17, %16 : vector<8x8x32xf32>
    %19 = arith.divf %17, %18 : vector<8x8x32xf32>
    %20 = vector.extract_strided_slice %13 {offsets = [0, 0, 32], sizes = [8, 8, 32], strides = [1, 1, 1]} : vector<8x8x64xf32> to vector<8x8x32xf32>
    %cst_8 = arith.constant 0.000000e+00 : f32
    %21 = vector.broadcast %cst_8 : f32 to vector<8x8x32xf32>
    %22 = arith.maximumf %20, %21 : vector<8x8x32xf32>
    %23 = math.absf %20 : vector<8x8x32xf32>
    %cst_9 = arith.constant 0.000000e+00 : f32
    %24 = vector.broadcast %cst_9 : f32 to vector<8x8x32xf32>
    %25 = arith.subf %24, %23 : vector<8x8x32xf32>
    %26 = math.exp %25 : vector<8x8x32xf32>
    %27 = math.log1p %26 : vector<8x8x32xf32>
    %28 = arith.addf %22, %27 : vector<8x8x32xf32>
    %29 = arith.mulf %19, %28 : vector<8x8x32xf32>
    %cst_10 = arith.constant dense<0.000000e+00> : vector<8x32xf32>
    %30 = vector.multi_reduction <add>, %29, %cst_10 [1] : vector<8x8x32xf32> to vector<8x32xf32>
    %31 = arith.addf %3, %30 : vector<8x32xf32>
    %c0_11 = arith.constant 0 : index
    %c8 = arith.constant 8 : index
    %c0_12 = arith.constant 0 : index
    %32 = vector.load %arg2[%c0_11, %c8, %c0_12] : memref<8x12x64xf32, #tpu.memory_space<vmem>>, vector<8x4x64xf32>
    %33 = vector.shape_cast %0 : vector<8x64xf32> to vector<8x1x64xf32>
    %34 = vector.broadcast %33 : vector<8x1x64xf32> to vector<8x4x64xf32>
    %35 = arith.addf %32, %34 : vector<8x4x64xf32>
    %36 = vector.shape_cast %1 : vector<1x64xf32> to vector<1x1x64xf32>
    %37 = vector.broadcast %36 : vector<1x1x64xf32> to vector<8x4x64xf32>
    %38 = arith.mulf %35, %37 : vector<8x4x64xf32>
    %39 = vector.shape_cast %2 : vector<1x64xf32> to vector<1x1x64xf32>
    %40 = vector.broadcast %39 : vector<1x1x64xf32> to vector<8x4x64xf32>
    %41 = arith.addf %38, %40 : vector<8x4x64xf32>
    %42 = vector.extract_strided_slice %41 {offsets = [0, 0, 0], sizes = [8, 4, 32], strides = [1, 1, 1]} : vector<8x4x64xf32> to vector<8x4x32xf32>
    %43 = arith.negf %42 : vector<8x4x32xf32>
    %44 = math.exp %43 : vector<8x4x32xf32>
    %cst_13 = arith.constant 1.000000e+00 : f32
    %45 = vector.broadcast %cst_13 : f32 to vector<8x4x32xf32>
    %46 = arith.addf %45, %44 : vector<8x4x32xf32>
    %47 = arith.divf %45, %46 : vector<8x4x32xf32>
    %48 = vector.extract_strided_slice %41 {offsets = [0, 0, 32], sizes = [8, 4, 32], strides = [1, 1, 1]} : vector<8x4x64xf32> to vector<8x4x32xf32>
    %cst_14 = arith.constant 0.000000e+00 : f32
    %49 = vector.broadcast %cst_14 : f32 to vector<8x4x32xf32>
    %50 = arith.maximumf %48, %49 : vector<8x4x32xf32>
    %51 = math.absf %48 : vector<8x4x32xf32>
    %cst_15 = arith.constant 0.000000e+00 : f32
    %52 = vector.broadcast %cst_15 : f32 to vector<8x4x32xf32>
    %53 = arith.subf %52, %51 : vector<8x4x32xf32>
    %54 = math.exp %53 : vector<8x4x32xf32>
    %55 = math.log1p %54 : vector<8x4x32xf32>
    %56 = arith.addf %50, %55 : vector<8x4x32xf32>
    %57 = arith.mulf %47, %56 : vector<8x4x32xf32>
    %cst_16 = arith.constant dense<0.000000e+00> : vector<8x32xf32>
    %58 = vector.multi_reduction <add>, %57, %cst_16 [1] : vector<8x4x32xf32> to vector<8x32xf32>
    %59 = arith.addf %31, %58 : vector<8x32xf32>
    %c0_17 = arith.constant 0 : index
    %c0_18 = arith.constant 0 : index
    %60 = vector.load %arg4[%c0_17, %c0_18] : memref<8x32xf32, #tpu.memory_space<vmem>>, vector<8x32xf32>
    tpu.vector_store %arg4[%c0_17, %c0_18], %59 {strides = array<i32>} : memref<8x32xf32, #tpu.memory_space<vmem>>, vector<8x32xf32>,
    %c8_i32 = arith.constant 8 : i32
    %61 = arith.muli %arg0, %c8_i32 : i32
    %62 = tpu.iota {dimensions = array<i32: 0>} : vector<8x32xi32>
    %63 = vector.broadcast %61 : i32 to vector<8x32xi32>
    %64 = arith.addi %63, %62 : vector<8x32xi32>
    %c20_i32 = arith.constant 20 : i32
    %65 = vector.broadcast %c20_i32 : i32 to vector<8x32xi32>
    %66 = arith.cmpi slt, %64, %65 : vector<8x32xi32>
    %67 = arith.extui %66 : vector<8x32xi1> to vector<8x32xi32>
    %68 = arith.sitofp %67 : vector<8x32xi32> to vector<8x32xf32>
    %69 = arith.mulf %59, %68 : vector<8x32xf32>
    %cst_19 = arith.constant dense<0.000000e+00> : vector<32xf32>
    %70 = vector.multi_reduction <add>, %69, %cst_19 [0] : vector<8x32xf32> to vector<32xf32>
    %71 = vector.shape_cast %70 : vector<32xf32> to vector<1x32xf32>
    %72 = arith.mulf %69, %59 : vector<8x32xf32>
    %cst_20 = arith.constant dense<0.000000e+00> : vector<32xf32>
    %73 = vector.multi_reduction <add>, %72, %cst_20 [0] : vector<8x32xf32> to vector<32xf32>
    %74 = vector.shape_cast %73 : vector<32xf32> to vector<1x32xf32>
    %75 = tpu.concatenate %71, %74 in 0 : vector<1x32xf32>, vector<1x32xf32> -> vector<2x32xf32>
    %76 = vector.shape_cast %75 : vector<2x32xf32> to vector<1x2x32xf32>
    %c0_21 = arith.constant 0 : index
    %c0_22 = arith.constant 0 : index
    %c0_23 = arith.constant 0 : index
    %77 = vector.load %arg5[%c0_21, %c0_22, %c0_23] : memref<1x2x32xf32, #tpu.memory_space<vmem>>, vector<1x2x32xf32>
    tpu.vector_store %arg5[%c0_21, %c0_22, %c0_23], %76 {strides = array<i32>} : memref<1x2x32xf32, #tpu.memory_space<vmem>>, vector<1x2x32xf32>,
    return
  }
  func.func @transform_0(%arg0: i32) -> (i32, i32) {
    %c0_i32 = arith.constant 0 : i32
    %c0_i32_0 = arith.constant 0 : i32
    return %arg0, %c0_i32 : i32, i32
  }
  func.func @transform_1(%arg0: i32) -> (i32, i32, i32) {
    %c0_i32 = arith.constant 0 : i32
    %c0_i32_0 = arith.constant 0 : i32
    %c0_i32_1 = arith.constant 0 : i32
    return %arg0, %c0_i32, %c0_i32_0 : i32, i32, i32
  }
  func.func @transform_2(%arg0: i32) -> (i32, i32) {
    %c0_i32 = arith.constant 0 : i32
    %c0_i32_0 = arith.constant 0 : i32
    %c0_i32_1 = arith.constant 0 : i32
    return %c0_i32, %c0_i32_0 : i32, i32
  }
  func.func @transform_3(%arg0: i32) -> (i32, i32) {
    %c0_i32 = arith.constant 0 : i32
    %c0_i32_0 = arith.constant 0 : i32
    return %arg0, %c0_i32 : i32, i32
  }
  func.func @transform_4(%arg0: i32) -> (i32, i32, i32) {
    %c0_i32 = arith.constant 0 : i32
    %c0_i32_0 = arith.constant 0 : i32
    %c0_i32_1 = arith.constant 0 : i32
    return %arg0, %c0_i32, %c0_i32_0 : i32, i32, i32
  }
}

</mosaic_0001>

<llo_original>
// kernel: conv_layer_forward.2
$region0: #{conv_layer_forward.2}
  #allocation0 [shape = 'u32[]', space=smem, size = 0x4, offset = 0x4, fixed_abs, tag = 'smem constant byte address 0x4 - core index']
  #allocation1 [shape = 'u32[144,128]{1,0:T(1,128)}', space=vmem, size = 0x12000, scoped, tag = 'internal scratch']
  %s0 = inlined_call_operand.vmem [shape: f32[24,64], index: 0, kind: input, shape index: {}]
  %s1 = inlined_call_operand.vmem [shape: f32[24,12,64], index: 1, kind: input, shape index: {}]
  %s2 = inlined_call_operand.vmem [shape: f32[3,2,64], index: 2, kind: output, shape index: {}]
  %s3 = sld [smem:[#allocation0]]
  $region41: #{conv_layer_forward.2} parent=0
    _
  %s5 = ssub.s32 1, %s3
  %s6 = scalar_select 0, %s5, %s3
  loop: start=0, step=1, limit=5
  $region2: #{conv_layer_forward.2} parent=0 // loop_pre_header
    _
  $region3: #{conv_layer_forward.2} parent=0 // loop_header
    %s8 = sphi 0, %s12
    %p9 = scmp.ge.s32.totalorder %s8, 5
    %s18 = sphi 0, %s20
    %s21 = sphi 0, %s18
    %s22 = sphi 0, %s21
    %s38 = sphi 0, %s22
    %s44 = sphi 0, %s46
    %s47 = sphi 0, %s44
    %s48 = sphi 0, %s47
    %s64 = sphi 0, %s48
    %s70 = sphi 0, %s72
    %s73 = sphi 0, %s70
    %s74 = sphi 0, %s73
    %s90 = sphi 0, %s74
  $region4: #{conv_layer_forward.2} parent=0 // loop_header_branch
    %11 = sbr.rel (%p9) target = $region8
  $region5: #{conv_layer_forward.2} parent=0 // loop_body
    %s13 = ssub.s32 %s8, 1
    %s14 = ssub.s32 %s8, 2
    %s15 = sadd.s32 %s8, 1
    %s16 = ssub.s32 %s8, %s15
    %p17 = scmp.eq.s32.totalorder %s16, 0
    %s19 = sadd.s32 %s18, 1
    %s20 = scalar_select %p17, %s18, %s19
    %p23 = pneg %p17
    %p24 = scmp.eq.s32.totalorder %s8, 2
    %p25 = por %p23, %p24
    %p26 = scmp.ne.s32.totalorder %s18, %s21
    %p27 = scmp.eq.s32.totalorder %s8, 0
    %p28 = por %p26, %p27
    %p29 = scmp.ne.s32.totalorder %s18, %s21
    %p30 = scmp.eq.s32.totalorder %s13, 2
    %p31 = por %p29, %p30
    %p32 = scmp.ne.s32.totalorder %s21, %s22
    %p33 = scmp.eq.s32.totalorder %s13, 0
    %p34 = por %p32, %p33
    %p35 = scmp.ne.s32.totalorder %s21, %s22
    %p36 = scmp.eq.s32.totalorder %s14, 2
    %p37 = por %p35, %p36
    %p39 = scmp.ne.s32.totalorder %s22, %s38
    %p40 = scmp.eq.s32.totalorder %s14, 0
    %p41 = por %p39, %p40
    %s42 = ssub.s32 %s8, %s15
    %p43 = scmp.eq.s32.totalorder %s42, 0
    %s45 = sadd.s32 %s44, 1
    %s46 = scalar_select %p43, %s44, %s45
    %p49 = pneg %p43
    %p50 = scmp.eq.s32.totalorder %s8, 2
    %p51 = por %p49, %p50
    %p52 = scmp.ne.s32.totalorder %s44, %s47
    %p53 = scmp.eq.s32.totalorder %s8, 0
    %p54 = por %p52, %p53
    %p55 = scmp.ne.s32.totalorder %s44, %s47
    %p56 = scmp.eq.s32.totalorder %s13, 2
    %p57 = por %p55, %p56
    %p58 = scmp.ne.s32.totalorder %s47, %s48
    %p59 = scmp.eq.s32.totalorder %s13, 0
    %p60 = por %p58, %p59
    %p61 = scmp.ne.s32.totalorder %s47, %s48
    %p62 = scmp.eq.s32.totalorder %s14, 2
    %p63 = por %p61, %p62
    %p65 = scmp.ne.s32.totalorder %s48, %s64
    %p66 = scmp.eq.s32.totalorder %s14, 0
    %p67 = por %p65, %p66
    %s68 = ssub.s32 %s8, %s15
    %p69 = scmp.eq.s32.totalorder %s68, 0
    %s71 = sadd.s32 %s70, 1
    %s72 = scalar_select %p69, %s70, %s71
    %p75 = pneg %p69
    %p76 = scmp.eq.s32.totalorder %s8, 2
    %p77 = por %p75, %p76
    %p78 = scmp.ne.s32.totalorder %s70, %s73
    %p79 = scmp.eq.s32.totalorder %s8, 0
    %p80 = por %p78, %p79
    %p81 = scmp.ne.s32.totalorder %s70, %s73
    %p82 = scmp.eq.s32.totalorder %s13, 2
    %p83 = por %p81, %p82
    %p84 = scmp.ne.s32.totalorder %s73, %s74
    %p85 = scmp.eq.s32.totalorder %s13, 0
    %p86 = por %p84, %p85
    %p87 = scmp.ne.s32.totalorder %s73, %s74
    %p88 = scmp.eq.s32.totalorder %s14, 2
    %p89 = por %p87, %p88
    %p91 = scmp.ne.s32.totalorder %s74, %s90
    %p92 = scmp.eq.s32.totalorder %s14, 0
    %p93 = por %p91, %p92
    %p94 = scmp.le.s32.totalorder 1, %s8
    %p95 = scmp.lt.s32.totalorder %s8, 4
    %p96 = pnand %p94, %p95
    %p97 = pneg %p96
    // Predicated region
    $region9: #{conv_layer_forward.2} parent=5 // pred_check
      _
    $region10: #{conv_layer_forward.2} parent=5 // pred_check_branch
      %99 = sbr.rel (%p96) target = $region12
    $region11: #{conv_layer_forward.2} parent=5 // pred_region
      %s100 = ssub.s32 %s8, 1
    $region12: #{conv_layer_forward.2} parent=5 // pred_fallthru
      _
    %p101 = scmp.lt.s32.totalorder %s8, 3
    // Predicated region
    $region13: #{conv_layer_forward.2} parent=5 // pred_check
      %p102 = pneg %p101
    $region14: #{conv_layer_forward.2} parent=5 // pred_check_branch
      %104 = sbr.rel (%p102) target = $region16
    $region15: #{conv_layer_forward.2} parent=5 // pred_region
      // Predicated region
      $region17: #{conv_layer_forward.2} parent=15 // pred_check
        %p105 = pneg %p28
      $region18: #{conv_layer_forward.2} parent=15 // pred_check_branch
        %107 = sbr.rel (%p105) target = $region20
      $region19: #{conv_layer_forward.2} parent=15 // pred_region
        %p108 = scmp.lt.s32.totalorder %s8, 2
        %s109 = scalar_select %p108, %s8, 2
        %s110 = smul.addr %s109, 8
        %s111 = scalar_lea.vmem %s0, %s110
      $region20: #{conv_layer_forward.2} parent=15 // pred_fallthru
        _
      // Predicated region
      $region21: #{conv_layer_forward.2} parent=15 // pred_check
        %p112 = pneg %p54
      $region22: #{conv_layer_forward.2} parent=15 // pred_check_branch
        %114 = sbr.rel (%p112) target = $region24
      $region23: #{conv_layer_forward.2} parent=15 // pred_region
        %s115 = smul.u32 8, %s8
        %p116 = scmp.lt.s32.totalorder %s115, 23
        %s117 = scalar_select %p116, %s115, 23
        %s118 = smul.addr %s117, 2
        %s119 = smul.addr %s118, 8
        %s120 = scalar_lea.vmem %s1, %s119
        %s121 = smul.u32 8, %s8
      $region24: #{conv_layer_forward.2} parent=15 // pred_fallthru
        _
    $region16: #{conv_layer_forward.2} parent=5 // pred_fallthru
      _
    %p122 = scmp.le.s32.totalorder 1, %s8
    %p123 = scmp.lt.s32.totalorder %s8, 4
    %p124 = pnand %p122, %p123
    %p125 = pneg %p124
    // Predicated region
    $region25: #{conv_layer_forward.2} parent=5 // pred_check
      _
    $region26: #{conv_layer_forward.2} parent=5 // pred_check_branch
      %127 = sbr.rel (%p124) target = $region28
    $region27: #{conv_layer_forward.2} parent=5 // pred_region
      %s128 = ssub.s32 %s8, 1
      %p129 = scmp.lt.s32.totalorder %s13, 2
      %s130 = scalar_select %p129, %s13, 2
      %s131 = smul.addr %s130, 8
      %s132 = scalar_lea.vmem %s0, %s131
      %p133 = pneg %p34
      %p134 = pneg %p31
      %s135 = smul.u32 8, %s13
      %p136 = scmp.lt.s32.totalorder %s135, 23
      %s137 = scalar_select %p136, %s135, 23
      %s138 = smul.addr %s137, 2
      %s139 = smul.addr %s138, 8
      %s140 = scalar_lea.vmem %s1, %s139
      %p141 = pneg %p60
      %p142 = pneg %p57
      %p143 = pneg %p86
      %p144 = pneg %p83
      %p145 = scmp.lt.s32.totalorder %s13, 2
      %s146 = scalar_select %p145, %s13, 2
      %s147 = smul.addr %s146, 2
      %s148 = scalar_lea.vmem %s2, %s147
      %p149 = scmp.lt.s32.totalorder %s13, 2
      %s150 = scalar_select %p149, %s13, 2
      %s151 = smul.addr %s150, 8
      %s152 = scalar_lea.vmem %s0, %s151
      %s153 = smul.u32 8, %s13
      %p154 = scmp.lt.s32.totalorder %s153, 23
      %s155 = scalar_select %p154, %s153, 23
      %s156 = smul.addr %s155, 2
      %s157 = smul.addr %s156, 8
      %s158 = scalar_lea.vmem %s1, %s157
      %s159 = smul.u32 8, %s13
      %p160 = scmp.lt.s32.totalorder %s13, 2
      %s161 = scalar_select %p160, %s13, 2
      %s162 = smul.addr %s161, 2
      %s163 = scalar_lea.vmem %s2, %s162
      %v164 = vld [vmem:[%s152] sm:$0xff]
      %v165 = vld [vmem:[%s158] sm:$0xff]
      %v166 = vld [vmem:[%s158 + $0x10] sm:$0xff]
      %v167 = vld [vmem:[%s158 + $0x20] sm:$0xff]
      %v168 = vld [vmem:[%s158 + $0x30] sm:$0xff]
      %v169 = vld [vmem:[%s158 + $0x40] sm:$0xff]
      %v170 = vld [vmem:[%s158 + $0x50] sm:$0xff]
      %v171 = vld [vmem:[%s158 + $0x60] sm:$0xff]
      %v172 = vld [vmem:[%s158 + $0x70] sm:$0xff]
      %v174 = vcombine.high %v164, %v164
      %v176 = vunpack.c.l.s4 1966171168
      %v177 = vunpack.c.0.s8 %v176
      %v178 = vlaneseq
      %v179 = vshrl.u32 %v178, 7
      %v180 = vsub.s32 %v177, %v179
      %v181 = vrot.slane %v164, %v180
      %v183 = vunpack.c.l.s4 1966171168
      %v184 = vunpack.c.0.s8 %v183
      %v185 = vlaneseq
      %v186 = vshrl.u32 %v185, 7
      %v187 = vsub.s32 %v184, %v186
      %v188 = vrot.slane %v174, %v187
      %v189 = vcombine.high %v181, %v181
      %v190 = vcombine.high %v188, %v188
      %v192 = vunpack.c.l.s4 1966171168
      %v193 = vunpack.c.0.s8 %v192
      %v194 = vlaneseq
      %v195 = vshrl.u32 %v194, 7
      %v196 = vsub.s32 %v193, %v195
      %v197 = vrot.slane %v181, %v196
      %v199 = vunpack.c.l.s4 1966171168
      %v200 = vunpack.c.0.s8 %v199
      %v201 = vlaneseq
      %v202 = vshrl.u32 %v201, 7
      %v203 = vsub.s32 %v200, %v202
      %v204 = vrot.slane %v188, %v203
      %v206 = vunpack.c.l.s4 1966171168
      %v207 = vunpack.c.0.s8 %v206
      %v208 = vlaneseq
      %v209 = vshrl.u32 %v208, 7
      %v210 = vsub.s32 %v207, %v209
      %v211 = vrot.slane %v189, %v210
      %v213 = vunpack.c.l.s4 1966171168
      %v214 = vunpack.c.0.s8 %v213
      %v215 = vlaneseq
      %v216 = vshrl.u32 %v215, 7
      %v217 = vsub.s32 %v214, %v216
      %v218 = vrot.slane %v190, %v217
      %v219 = vcombine.high %v197, %v197
      %v220 = vcombine.high %v204, %v204
      %v221 = vcombine.high %v211, %v211
      %v222 = vcombine.high %v218, %v218
      %v223 = vlaneseq
      %v224 = vshrl.u32 %v223, 7
      %v225 = vsub.s32 0, %v224
      %v226 = vrot.slane %v197, %v225
      %v227 = vlaneseq
      %v228 = vshrl.u32 %v227, 7
      %v229 = vsub.s32 0, %v228
      %v230 = vrot.slane %v211, %v229
      %v231 = vlaneseq
      %v232 = vshrl.u32 %v231, 7
      %v233 = vsub.s32 0, %v232
      %v234 = vrot.slane %v219, %v233
      %v235 = vlaneseq
      %v236 = vshrl.u32 %v235, 7
      %v237 = vsub.s32 0, %v236
      %v238 = vrot.slane %v221, %v237
      %v239 = vlaneseq
      %v240 = vshrl.u32 %v239, 7
      %v241 = vsub.s32 0, %v240
      %v242 = vrot.slane %v204, %v241
      %v243 = vlaneseq
      %v244 = vshrl.u32 %v243, 7
      %v245 = vsub.s32 0, %v244
      %v246 = vrot.slane %v218, %v245
      %v247 = vlaneseq
      %v248 = vshrl.u32 %v247, 7
      %v249 = vsub.s32 0, %v248
      %v250 = vrot.slane %v220, %v249
      %v251 = vlaneseq
      %v252 = vshrl.u32 %v251, 7
      %v253 = vsub.s32 0, %v252
      %v254 = vrot.slane %v222, %v253
      %v263 = vadd.f32 %v165, %v226
      %v264 = vadd.f32 %v166, %v230
      %v265 = vadd.f32 %v167, %v234
      %v266 = vadd.f32 %v168, %v238
      %v267 = vadd.f32 %v169, %v242
      %v268 = vadd.f32 %v170, %v246
      %v269 = vadd.f32 %v171, %v250
      %v270 = vadd.f32 %v172, %v254
      %vm271 = vcmask 523264
      %v272 = vsel %vm271, %v263, 0.0
      %v273 = vrot.slane %v272, 4
      %v274 = vadd.f32 %v272, %v273
      %v275 = vrot.slane %v274, 2
      %v276 = vadd.f32 %v274, %v275
      %v277 = vrot.slane %v276, 1
      %v278 = vadd.f32 %v276, %v277
      %v279 = vsel %vm271, %v264, 0.0
      %v280 = vrot.slane %v279, 4
      %v281 = vadd.f32 %v279, %v280
      %v282 = vrot.slane %v281, 2
      %v283 = vadd.f32 %v281, %v282
      %v284 = vrot.slane %v283, 1
      %v285 = vadd.f32 %v283, %v284
      %v286 = vsel %vm271, %v265, 0.0
      %v287 = vrot.slane %v286, 4
      %v288 = vadd.f32 %v286, %v287
      %v289 = vrot.slane %v288, 2
      %v290 = vadd.f32 %v288, %v289
      %v291 = vrot.slane %v290, 1
      %v292 = vadd.f32 %v290, %v291
      %v293 = vsel %vm271, %v266, 0.0
      %v294 = vrot.slane %v293, 4
      %v295 = vadd.f32 %v293, %v294
      %v296 = vrot.slane %v295, 2
      %v297 = vadd.f32 %v295, %v296
      %v298 = vrot.slane %v297, 1
      %v299 = vadd.f32 %v297, %v298
      %v300 = vsel %vm271, %v267, 0.0
      %v301 = vrot.slane %v300, 4
      %v302 = vadd.f32 %v300, %v301
      %v303 = vrot.slane %v302, 2
      %v304 = vadd.f32 %v302, %v303
      %v305 = vrot.slane %v304, 1
      %v306 = vadd.f32 %v304, %v305
      %v307 = vsel %vm271, %v268, 0.0
      %v308 = vrot.slane %v307, 4
      %v309 = vadd.f32 %v307, %v308
      %v310 = vrot.slane %v309, 2
      %v311 = vadd.f32 %v309, %v310
      %v312 = vrot.slane %v311, 1
      %v313 = vadd.f32 %v311, %v312
      %v314 = vsel %vm271, %v269, 0.0
      %v315 = vrot.slane %v314, 4
      %v316 = vadd.f32 %v314, %v315
      %v317 = vrot.slane %v316, 2
      %v318 = vadd.f32 %v316, %v317
      %v319 = vrot.slane %v318, 1
      %v320 = vadd.f32 %v318, %v319
      %v321 = vsel %vm271, %v270, 0.0
      %v322 = vrot.slane %v321, 4
      %v323 = vadd.f32 %v321, %v322
      %v324 = vrot.slane %v323, 2
      %v325 = vadd.f32 %v323, %v324
      %v326 = vrot.slane %v325, 1
      %v327 = vadd.f32 %v325, %v326
      %v328 = vadd.f32 %v278, 0.0
      %v329 = vadd.f32 %v285, 0.0
      %v330 = vadd.f32 %v292, 0.0
      %v331 = vadd.f32 %v299, 0.0
      %v332 = vadd.f32 %v306, 0.0
      %v333 = vadd.f32 %v313, 0.0
      %v334 = vadd.f32 %v320, 0.0
      %v335 = vadd.f32 %v327, 0.0
      %v336 = vmul.f32 %v263, %v263
      %v337 = vmul.f32 %v264, %v264
      %v338 = vmul.f32 %v265, %v265
      %v339 = vmul.f32 %v266, %v266
      %v340 = vmul.f32 %v267, %v267
      %v341 = vmul.f32 %v268, %v268
      %v342 = vmul.f32 %v269, %v269
      %v343 = vmul.f32 %v270, %v270
      %v344 = vsel %vm271, %v336, 0.0
      %v345 = vrot.slane %v344, 4
      %v346 = vadd.f32 %v344, %v345
      %v347 = vrot.slane %v346, 2
      %v348 = vadd.f32 %v346, %v347
      %v349 = vrot.slane %v348, 1
      %v350 = vadd.f32 %v348, %v349
      %v351 = vsel %vm271, %v337, 0.0
      %v352 = vrot.slane %v351, 4
      %v353 = vadd.f32 %v351, %v352
      %v354 = vrot.slane %v353, 2
      %v355 = vadd.f32 %v353, %v354
      %v356 = vrot.slane %v355, 1
      %v357 = vadd.f32 %v355, %v356
      %v358 = vsel %vm271, %v338, 0.0
      %v359 = vrot.slane %v358, 4
      %v360 = vadd.f32 %v358, %v359
      %v361 = vrot.slane %v360, 2
      %v362 = vadd.f32 %v360, %v361
      %v363 = vrot.slane %v362, 1
      %v364 = vadd.f32 %v362, %v363
      %v365 = vsel %vm271, %v339, 0.0
      %v366 = vrot.slane %v365, 4
      %v367 = vadd.f32 %v365, %v366
      %v368 = vrot.slane %v367, 2
      %v369 = vadd.f32 %v367, %v368
      %v370 = vrot.slane %v369, 1
      %v371 = vadd.f32 %v369, %v370
      %v372 = vsel %vm271, %v340, 0.0
      %v373 = vrot.slane %v372, 4
      %v374 = vadd.f32 %v372, %v373
      %v375 = vrot.slane %v374, 2
      %v376 = vadd.f32 %v374, %v375
      %v377 = vrot.slane %v376, 1
      %v378 = vadd.f32 %v376, %v377
      %v379 = vsel %vm271, %v341, 0.0
      %v380 = vrot.slane %v379, 4
      %v381 = vadd.f32 %v379, %v380
      %v382 = vrot.slane %v381, 2
      %v383 = vadd.f32 %v381, %v382
      %v384 = vrot.slane %v383, 1
      %v385 = vadd.f32 %v383, %v384
      %v386 = vsel %vm271, %v342, 0.0
      %v387 = vrot.slane %v386, 4
      %v388 = vadd.f32 %v386, %v387
      %v389 = vrot.slane %v388, 2
      %v390 = vadd.f32 %v388, %v389
      %v391 = vrot.slane %v390, 1
      %v392 = vadd.f32 %v390, %v391
      %v393 = vsel %vm271, %v343, 0.0
      %v394 = vrot.slane %v393, 4
      %v395 = vadd.f32 %v393, %v394
      %v396 = vrot.slane %v395, 2
      %v397 = vadd.f32 %v395, %v396
      %v398 = vrot.slane %v397, 1
      %v399 = vadd.f32 %v397, %v398
      %v400 = vadd.f32 %v350, 0.0
      %v401 = vadd.f32 %v357, 0.0
      %v402 = vadd.f32 %v364, 0.0
      %v403 = vadd.f32 %v371, 0.0
      %v404 = vadd.f32 %v378, 0.0
      %v405 = vadd.f32 %v385, 0.0
      %v406 = vadd.f32 %v392, 0.0
      %v407 = vadd.f32 %v399, 0.0
      %v408 = vld [vmem:[%s158 + $0x8] sm:$0xf]
      %v409 = vld [vmem:[%s158 + $0x18] sm:$0xf]
      %v410 = vld [vmem:[%s158 + $0x28] sm:$0xf]
      %v411 = vld [vmem:[%s158 + $0x38] sm:$0xf]
      %v412 = vld [vmem:[%s158 + $0x48] sm:$0xf]
      %v413 = vld [vmem:[%s158 + $0x58] sm:$0xf]
      %v414 = vld [vmem:[%s158 + $0x68] sm:$0xf]
      %v415 = vld [vmem:[%s158 + $0x78] sm:$0xf]
      %v416 = vadd.f32 %v408, %v226
      %v417 = vadd.f32 %v409, %v230
      %v418 = vadd.f32 %v410, %v234
      %v419 = vadd.f32 %v411, %v238
      %v420 = vadd.f32 %v412, %v242
      %v421 = vadd.f32 %v413, %v246
      %v422 = vadd.f32 %v414, %v250
      %v423 = vadd.f32 %v415, %v254
      %vm424 = vcmask 519168
      %v425 = vsel %vm424, %v416, 0.0
      %v426 = vrot.slane %v425, 4
      %v427 = vadd.f32 %v425, %v426
      %v428 = vrot.slane %v427, 2
      %v429 = vadd.f32 %v427, %v428
      %v430 = vrot.slane %v429, 1
      %v431 = vadd.f32 %v429, %v430
      %v432 = vsel %vm424, %v417, 0.0
      %v433 = vrot.slane %v432, 4
      %v434 = vadd.f32 %v432, %v433
      %v435 = vrot.slane %v434, 2
      %v436 = vadd.f32 %v434, %v435
      %v437 = vrot.slane %v436, 1
      %v438 = vadd.f32 %v436, %v437
      %v439 = vsel %vm424, %v418, 0.0
      %v440 = vrot.slane %v439, 4
      %v441 = vadd.f32 %v439, %v440
      %v442 = vrot.slane %v441, 2
      %v443 = vadd.f32 %v441, %v442
      %v444 = vrot.slane %v443, 1
      %v445 = vadd.f32 %v443, %v444
      %v446 = vsel %vm424, %v419, 0.0
      %v447 = vrot.slane %v446, 4
      %v448 = vadd.f32 %v446, %v447
      %v449 = vrot.slane %v448, 2
      %v450 = vadd.f32 %v448, %v449
      %v451 = vrot.slane %v450, 1
      %v452 = vadd.f32 %v450, %v451
      %v453 = vsel %vm424, %v420, 0.0
      %v454 = vrot.slane %v453, 4
      %v455 = vadd.f32 %v453, %v454
      %v456 = vrot.slane %v455, 2
      %v457 = vadd.f32 %v455, %v456
      %v458 = vrot.slane %v457, 1
      %v459 = vadd.f32 %v457, %v458
      %v460 = vsel %vm424, %v421, 0.0
      %v461 = vrot.slane %v460, 4
      %v462 = vadd.f32 %v460, %v461
      %v463 = vrot.slane %v462, 2
      %v464 = vadd.f32 %v462, %v463
      %v465 = vrot.slane %v464, 1
      %v466 = vadd.f32 %v464, %v465
      %v467 = vsel %vm424, %v422, 0.0
      %v468 = vrot.slane %v467, 4
      %v469 = vadd.f32 %v467, %v468
      %v470 = vrot.slane %v469, 2
      %v471 = vadd.f32 %v469, %v470
      %v472 = vrot.slane %v471, 1
      %v473 = vadd.f32 %v471, %v472
      %v474 = vsel %vm424, %v423, 0.0
      %v475 = vrot.slane %v474, 4
      %v476 = vadd.f32 %v474, %v475
      %v477 = vrot.slane %v476, 2
      %v478 = vadd.f32 %v476, %v477
      %v479 = vrot.slane %v478, 1
      %v480 = vadd.f32 %v478, %v479
      %v481 = vadd.f32 %v328, %v431
      %v482 = vadd.f32 %v329, %v438
      %v483 = vadd.f32 %v330, %v445
      %v484 = vadd.f32 %v331, %v452
      %v485 = vadd.f32 %v332, %v459
      %v486 = vadd.f32 %v333, %v466
      %v487 = vadd.f32 %v334, %v473
      %v488 = vadd.f32 %v335, %v480
      %v489 = vmul.f32 %v416, %v416
      %v490 = vmul.f32 %v417, %v417
      %v491 = vmul.f32 %v418, %v418
      %v492 = vmul.f32 %v419, %v419
      %v493 = vmul.f32 %v420, %v420
      %v494 = vmul.f32 %v421, %v421
      %v495 = vmul.f32 %v422, %v422
      %v496 = vmul.f32 %v423, %v423
      %v497 = vsel %vm424, %v489, 0.0
      %v498 = vrot.slane %v497, 4
      %v499 = vadd.f32 %v497, %v498
      %v500 = vrot.slane %v499, 2
      %v501 = vadd.f32 %v499, %v500
      %v502 = vrot.slane %v501, 1
      %v503 = vadd.f32 %v501, %v502
      %v504 = vsel %vm424, %v490, 0.0
      %v505 = vrot.slane %v504, 4
      %v506 = vadd.f32 %v504, %v505
      %v507 = vrot.slane %v506, 2
      %v508 = vadd.f32 %v506, %v507
      %v509 = vrot.slane %v508, 1
      %v510 = vadd.f32 %v508, %v509
      %v511 = vsel %vm424, %v491, 0.0
      %v512 = vrot.slane %v511, 4
      %v513 = vadd.f32 %v511, %v512
      %v514 = vrot.slane %v513, 2
      %v515 = vadd.f32 %v513, %v514
      %v516 = vrot.slane %v515, 1
      %v517 = vadd.f32 %v515, %v516
      %v518 = vsel %vm424, %v492, 0.0
      %v519 = vrot.slane %v518, 4
      %v520 = vadd.f32 %v518, %v519
      %v521 = vrot.slane %v520, 2
      %v522 = vadd.f32 %v520, %v521
      %v523 = vrot.slane %v522, 1
      %v524 = vadd.f32 %v522, %v523
      %v525 = vsel %vm424, %v493, 0.0
      %v526 = vrot.slane %v525, 4
      %v527 = vadd.f32 %v525, %v526
      %v528 = vrot.slane %v527, 2
      %v529 = vadd.f32 %v527, %v528
      %v530 = vrot.slane %v529, 1
      %v531 = vadd.f32 %v529, %v530
      %v532 = vsel %vm424, %v494, 0.0
      %v533 = vrot.slane %v532, 4
      %v534 = vadd.f32 %v532, %v533
      %v535 = vrot.slane %v534, 2
      %v536 = vadd.f32 %v534, %v535
      %v537 = vrot.slane %v536, 1
      %v538 = vadd.f32 %v536, %v537
      %v539 = vsel %vm424, %v495, 0.0
      %v540 = vrot.slane %v539, 4
      %v541 = vadd.f32 %v539, %v540
      %v542 = vrot.slane %v541, 2
      %v543 = vadd.f32 %v541, %v542
      %v544 = vrot.slane %v543, 1
      %v545 = vadd.f32 %v543, %v544
      %v546 = vsel %vm424, %v496, 0.0
      %v547 = vrot.slane %v546, 4
      %v548 = vadd.f32 %v546, %v547
      %v549 = vrot.slane %v548, 2
      %v550 = vadd.f32 %v548, %v549
      %v551 = vrot.slane %v550, 1
      %v552 = vadd.f32 %v550, %v551
      %v553 = vadd.f32 %v400, %v503
      %v554 = vadd.f32 %v401, %v510
      %v555 = vadd.f32 %v402, %v517
      %v556 = vadd.f32 %v403, %v524
      %v557 = vadd.f32 %v404, %v531
      %v558 = vadd.f32 %v405, %v538
      %v559 = vadd.f32 %v406, %v545
      %v560 = vadd.f32 %v407, %v552
      %s561 = smul.u32 %s13, 8
      %v562 = vlaneseq
      %v563 = vshrl.u32 %v562, 7
      %v564 = vstv %s561
      %v565 = vadd.s32 %v564, %v563
      %vm566 = vcmp.lt.s32.totalorder %v565, 20
      %v567 = vsel %vm566, 1, 0
      %v568 = vcvt.s32.f32 %v567
      %v570 = vrot.slane %v568, 1
      %v571 = vrot.slane %v568, 2
      %v572 = vrot.slane %v568, 3
      %v573 = vrot.slane %v568, 4
      %v574 = vrot.slane %v568, 5
      %v575 = vrot.slane %v568, 6
      %v576 = vrot.slane %v568, 7
      %v585 = vmul.f32 %v481, %v568
      %v586 = vmul.f32 %v482, %v570
      %v587 = vmul.f32 %v483, %v571
      %v588 = vmul.f32 %v484, %v572
      %v589 = vmul.f32 %v485, %v573
      %v590 = vmul.f32 %v486, %v574
      %v591 = vmul.f32 %v487, %v575
      %v592 = vmul.f32 %v488, %v576
      %v601 = vrot.slane %v586, 7
      %vm602 = vcmask 1041409
      %v603 = vsel %vm602, %v601, %v585
      %v604 = vrot.slane %v587, 6
      %vm605 = vcmask 1042434
      %v606 = vsel %vm605, %v604, %v603
      %v607 = vrot.slane %v588, 5
      %vm608 = vcmask 1043459
      %v609 = vsel %vm608, %v607, %v606
      %v610 = vrot.slane %v589, 4
      %vm611 = vcmask 1044484
      %v612 = vsel %vm611, %v610, %v609
      %v613 = vrot.slane %v590, 3
      %vm614 = vcmask 1045509
      %v615 = vsel %vm614, %v613, %v612
      %v616 = vrot.slane %v591, 2
      %vm617 = vcmask 1046534
      %v618 = vsel %vm617, %v616, %v615
      %v619 = vrot.slane %v592, 1
      %vm620 = vcmask 1047559
      %v621 = vsel %vm620, %v619, %v618
      %v623 = vsel %vm271, %v621, 0.0
      %v624 = vrot.slane %v623, 4
      %v625 = vadd.f32 %v623, %v624
      %v626 = vrot.slane %v625, 2
      %v627 = vadd.f32 %v625, %v626
      %v628 = vrot.slane %v627, 1
      %v629 = vadd.f32 %v627, %v628
      %v630 = vmul.f32 %v553, %v568
      %v631 = vmul.f32 %v554, %v570
      %v632 = vmul.f32 %v555, %v571
      %v633 = vmul.f32 %v556, %v572
      %v634 = vmul.f32 %v557, %v573
      %v635 = vmul.f32 %v558, %v574
      %v636 = vmul.f32 %v559, %v575
      %v637 = vmul.f32 %v560, %v576
      %v646 = vrot.slane %v631, 7
      %v647 = vsel %vm602, %v646, %v630
      %v648 = vrot.slane %v632, 6
      %v649 = vsel %vm605, %v648, %v647
      %v650 = vrot.slane %v633, 5
      %v651 = vsel %vm608, %v650, %v649
      %v652 = vrot.slane %v634, 4
      %v653 = vsel %vm611, %v652, %v651
      %v654 = vrot.slane %v635, 3
      %v655 = vsel %vm614, %v654, %v653
      %v656 = vrot.slane %v636, 2
      %v657 = vsel %vm617, %v656, %v655
      %v658 = vrot.slane %v637, 1
      %v659 = vsel %vm620, %v658, %v657
      %v661 = vsel %vm271, %v659, 0.0
      %v662 = vrot.slane %v661, 4
      %v663 = vadd.f32 %v661, %v662
      %v664 = vrot.slane %v663, 2
      %v665 = vadd.f32 %v663, %v664
      %v666 = vrot.slane %v665, 1
      %v667 = vadd.f32 %v665, %v666
      %v669 = vrot.slane %v667, 7
      %vm671 = vcmask 1040384
      %v672 = vsel %vm671, %v629, %v669
      %vm673 = vcmask 517120
      %674 = vst.msk [vmem:[%s163] sm:$0x3] %vm673, %v672
      %p675 = scmp.lt.s32.totalorder %s13, 2
      %s676 = scalar_select %p675, %s13, 2
      %s677 = smul.addr %s676, 2
      %s678 = scalar_lea.vmem %s2, %s677
      // Predicated region
      $region29: #{conv_layer_forward.2} parent=27 // pred_check
        %p679 = pneg %p83
      $region30: #{conv_layer_forward.2} parent=27 // pred_check_branch
        %681 = sbr.rel (%p679) target = $region32
      $region31: #{conv_layer_forward.2} parent=27 // pred_region
        _
      $region32: #{conv_layer_forward.2} parent=27 // pred_fallthru
        _
    $region28: #{conv_layer_forward.2} parent=5 // pred_fallthru
      _
    %p682 = scmp.le.s32.totalorder 2, %s8
    // Predicated region
    $region33: #{conv_layer_forward.2} parent=5 // pred_check
      %p683 = pneg %p682
    $region34: #{conv_layer_forward.2} parent=5 // pred_check_branch
      %685 = sbr.rel (%p683) target = $region36
    $region35: #{conv_layer_forward.2} parent=5 // pred_region
      %s686 = ssub.s32 %s8, 2
      // Predicated region
      $region37: #{conv_layer_forward.2} parent=35 // pred_check
        %p687 = pneg %p89
      $region38: #{conv_layer_forward.2} parent=35 // pred_check_branch
        %689 = sbr.rel (%p687) target = $region40
      $region39: #{conv_layer_forward.2} parent=35 // pred_region
        %p690 = scmp.lt.s32.totalorder %s14, 2
        %s691 = scalar_select %p690, %s14, 2
        %s692 = smul.addr %s691, 2
        %s693 = scalar_lea.vmem %s2, %s692
      $region40: #{conv_layer_forward.2} parent=35 // pred_fallthru
        _
    $region36: #{conv_layer_forward.2} parent=5 // pred_fallthru
      _
  $region6: #{conv_layer_forward.2} parent=0 // loop_footer
    %s12 = sadd.s32 1, %s8
  $region7: #{conv_layer_forward.2} parent=0 // loop_footer_branch
    %7 = sbr.rel target = $region3
  $region8: #{conv_layer_forward.2} parent=0 // loop_exit
    _

// kernel: conv_layer_forward.3
$region0: #{conv_layer_forward.3}
  #allocation0 [shape = 'u32[]', space=smem, size = 0x4, offset = 0x4, fixed_abs, tag = 'smem constant byte address 0x4 - core index']
  #allocation1 [shape = 'u32[144,128]{1,0:T(1,128)}', space=vmem, size = 0x12000, scoped, tag = 'internal scratch']
  %s0 = inlined_call_operand.vmem [shape: f32[24,64], index: 0, kind: input, shape index: {}]
  %s1 = inlined_call_operand.vmem [shape: f32[24,12,64], index: 1, kind: input, shape index: {}]
  %s2 = inlined_call_operand.vmem [shape: f32[2,64], index: 2, kind: input, shape index: {}]
  %s3 = inlined_call_operand.vmem [shape: f32[24,32], index: 3, kind: output, shape index: {0}]
  %s4 = inlined_call_operand.vmem [shape: f32[3,2,32], index: 4, kind: output, shape index: {1}]
  %5 = xla_tuple %s3, %s4
  %s6 = sld [smem:[#allocation0]]
  $region53: #{conv_layer_forward.3} parent=0
    _
  %s8 = ssub.s32 1, %s6
  %s9 = scalar_select 0, %s8, %s6
  loop: start=0, step=1, limit=5
  $region2: #{conv_layer_forward.3} parent=0 // loop_pre_header
    _
  $region3: #{conv_layer_forward.3} parent=0 // loop_header
    %s11 = sphi 0, %s15
    %p12 = scmp.ge.s32.totalorder %s11, 5
    %s21 = sphi 0, %s23
    %s24 = sphi 0, %s21
    %s25 = sphi 0, %s24
    %s41 = sphi 0, %s25
    %s47 = sphi 0, %s49
    %s50 = sphi 0, %s47
    %s51 = sphi 0, %s50
    %s67 = sphi 0, %s51
    %s71 = sphi 0, %s71
    %s73 = sphi 0, %s71
    %s74 = sphi 0, %s73
    %s88 = sphi 0, %s74
    %s94 = sphi 0, %s96
    %s97 = sphi 0, %s94
    %s98 = sphi 0, %s97
    %s114 = sphi 0, %s98
    %s120 = sphi 0, %s122
    %s123 = sphi 0, %s120
    %s124 = sphi 0, %s123
    %s140 = sphi 0, %s124
  $region4: #{conv_layer_forward.3} parent=0 // loop_header_branch
    %14 = sbr.rel (%p12) target = $region8
  $region5: #{conv_layer_forward.3} parent=0 // loop_body
    %s16 = ssub.s32 %s11, 1
    %s17 = ssub.s32 %s11, 2
    %s18 = sadd.s32 %s11, 1
    %s19 = ssub.s32 %s11, %s18
    %p20 = scmp.eq.s32.totalorder %s19, 0
    %s22 = sadd.s32 %s21, 1
    %s23 = scalar_select %p20, %s21, %s22
    %p26 = pneg %p20
    %p27 = scmp.eq.s32.totalorder %s11, 2
    %p28 = por %p26, %p27
    %p29 = scmp.ne.s32.totalorder %s21, %s24
    %p30 = scmp.eq.s32.totalorder %s11, 0
    %p31 = por %p29, %p30
    %p32 = scmp.ne.s32.totalorder %s21, %s24
    %p33 = scmp.eq.s32.totalorder %s16, 2
    %p34 = por %p32, %p33
    %p35 = scmp.ne.s32.totalorder %s24, %s25
    %p36 = scmp.eq.s32.totalorder %s16, 0
    %p37 = por %p35, %p36
    %p38 = scmp.ne.s32.totalorder %s24, %s25
    %p39 = scmp.eq.s32.totalorder %s17, 2
    %p40 = por %p38, %p39
    %p42 = scmp.ne.s32.totalorder %s25, %s41
    %p43 = scmp.eq.s32.totalorder %s17, 0
    %p44 = por %p42, %p43
    %s45 = ssub.s32 %s11, %s18
    %p46 = scmp.eq.s32.totalorder %s45, 0
    %s48 = sadd.s32 %s47, 1
    %s49 = scalar_select %p46, %s47, %s48
    %p52 = pneg %p46
    %p53 = scmp.eq.s32.totalorder %s11, 2
    %p54 = por %p52, %p53
    %p55 = scmp.ne.s32.totalorder %s47, %s50
    %p56 = scmp.eq.s32.totalorder %s11, 0
    %p57 = por %p55, %p56
    %p58 = scmp.ne.s32.totalorder %s47, %s50
    %p59 = scmp.eq.s32.totalorder %s16, 2
    %p60 = por %p58, %p59
    %p61 = scmp.ne.s32.totalorder %s50, %s51
    %p62 = scmp.eq.s32.totalorder %s16, 0
    %p63 = por %p61, %p62
    %p64 = scmp.ne.s32.totalorder %s50, %s51
    %p65 = scmp.eq.s32.totalorder %s17, 2
    %p66 = por %p64, %p65
    %p68 = scmp.ne.s32.totalorder %s51, %s67
    %p69 = scmp.eq.s32.totalorder %s17, 0
    %p70 = por %p68, %p69
    %s72 = sadd.s32 %s71, 1
    %p75 = scmp.eq.s32.totalorder %s11, 2
    %p76 = scmp.ne.s32.totalorder %s71, %s73
    %p77 = scmp.eq.s32.totalorder %s11, 0
    %p78 = por %p76, %p77
    %p79 = scmp.ne.s32.totalorder %s71, %s73
    %p80 = scmp.eq.s32.totalorder %s16, 2
    %p81 = por %p79, %p80
    %p82 = scmp.ne.s32.totalorder %s73, %s74
    %p83 = scmp.eq.s32.totalorder %s16, 0
    %p84 = por %p82, %p83
    %p85 = scmp.ne.s32.totalorder %s73, %s74
    %p86 = scmp.eq.s32.totalorder %s17, 2
    %p87 = por %p85, %p86
    %p89 = scmp.ne.s32.totalorder %s74, %s88
    %p90 = scmp.eq.s32.totalorder %s17, 0
    %p91 = por %p89, %p90
    %s92 = ssub.s32 %s11, %s18
    %p93 = scmp.eq.s32.totalorder %s92, 0
    %s95 = sadd.s32 %s94, 1
    %s96 = scalar_select %p93, %s94, %s95
    %p99 = pneg %p93
    %p100 = scmp.eq.s32.totalorder %s11, 2
    %p101 = por %p99, %p100
    %p102 = scmp.ne.s32.totalorder %s94, %s97
    %p103 = scmp.eq.s32.totalorder %s11, 0
    %p104 = por %p102, %p103
    %p105 = scmp.ne.s32.totalorder %s94, %s97
    %p106 = scmp.eq.s32.totalorder %s16, 2
    %p107 = por %p105, %p106
    %p108 = scmp.ne.s32.totalorder %s97, %s98
    %p109 = scmp.eq.s32.totalorder %s16, 0
    %p110 = por %p108, %p109
    %p111 = scmp.ne.s32.totalorder %s97, %s98
    %p112 = scmp.eq.s32.totalorder %s17, 2
    %p113 = por %p111, %p112
    %p115 = scmp.ne.s32.totalorder %s98, %s114
    %p116 = scmp.eq.s32.totalorder %s17, 0
    %p117 = por %p115, %p116
    %s118 = ssub.s32 %s11, %s18
    %p119 = scmp.eq.s32.totalorder %s118, 0
    %s121 = sadd.s32 %s120, 1
    %s122 = scalar_select %p119, %s120, %s121
    %p125 = pneg %p119
    %p126 = scmp.eq.s32.totalorder %s11, 2
    %p127 = por %p125, %p126
    %p128 = scmp.ne.s32.totalorder %s120, %s123
    %p129 = scmp.eq.s32.totalorder %s11, 0
    %p130 = por %p128, %p129
    %p131 = scmp.ne.s32.totalorder %s120, %s123
    %p132 = scmp.eq.s32.totalorder %s16, 2
    %p133 = por %p131, %p132
    %p134 = scmp.ne.s32.totalorder %s123, %s124
    %p135 = scmp.eq.s32.totalorder %s16, 0
    %p136 = por %p134, %p135
    %p137 = scmp.ne.s32.totalorder %s123, %s124
    %p138 = scmp.eq.s32.totalorder %s17, 2
    %p139 = por %p137, %p138
    %p141 = scmp.ne.s32.totalorder %s124, %s140
    %p142 = scmp.eq.s32.totalorder %s17, 0
    %p143 = por %p141, %p142
    %p144 = scmp.le.s32.totalorder 1, %s11
    %p145 = scmp.lt.s32.totalorder %s11, 4
    %p146 = pnand %p144, %p145
    %p147 = pneg %p146
    // Predicated region
    $region9: #{conv_layer_forward.3} parent=5 // pred_check
      _
    $region10: #{conv_layer_forward.3} parent=5 // pred_check_branch
      %149 = sbr.rel (%p146) target = $region12
    $region11: #{conv_layer_forward.3} parent=5 // pred_region
      %s150 = ssub.s32 %s11, 1
      // Predicated region
      $region13: #{conv_layer_forward.3} parent=11 // pred_check
        %p151 = pneg %p84
      $region14: #{conv_layer_forward.3} parent=11 // pred_check_branch
        %153 = sbr.rel (%p151) target = $region16
      $region15: #{conv_layer_forward.3} parent=11 // pred_region
        _
      $region16: #{conv_layer_forward.3} parent=11 // pred_fallthru
        _
    $region12: #{conv_layer_forward.3} parent=5 // pred_fallthru
      _
    %p154 = scmp.lt.s32.totalorder %s11, 3
    // Predicated region
    $region17: #{conv_layer_forward.3} parent=5 // pred_check
      %p155 = pneg %p154
    $region18: #{conv_layer_forward.3} parent=5 // pred_check_branch
      %157 = sbr.rel (%p155) target = $region20
    $region19: #{conv_layer_forward.3} parent=5 // pred_region
      // Predicated region
      $region21: #{conv_layer_forward.3} parent=19 // pred_check
        %p158 = pneg %p31
      $region22: #{conv_layer_forward.3} parent=19 // pred_check_branch
        %160 = sbr.rel (%p158) target = $region24
      $region23: #{conv_layer_forward.3} parent=19 // pred_region
        %p161 = scmp.lt.s32.totalorder %s11, 2
        %s162 = scalar_select %p161, %s11, 2
        %s163 = smul.addr %s162, 8
        %s164 = scalar_lea.vmem %s0, %s163
      $region24: #{conv_layer_forward.3} parent=19 // pred_fallthru
        _
      // Predicated region
      $region25: #{conv_layer_forward.3} parent=19 // pred_check
        %p165 = pneg %p57
      $region26: #{conv_layer_forward.3} parent=19 // pred_check_branch
        %167 = sbr.rel (%p165) target = $region28
      $region27: #{conv_layer_forward.3} parent=19 // pred_region
        %s168 = smul.u32 8, %s11
        %p169 = scmp.lt.s32.totalorder %s168, 23
        %s170 = scalar_select %p169, %s168, 23
        %s171 = smul.addr %s170, 2
        %s172 = smul.addr %s171, 8
        %s173 = scalar_lea.vmem %s1, %s172
        %s174 = smul.u32 8, %s11
      $region28: #{conv_layer_forward.3} parent=19 // pred_fallthru
        _
    $region20: #{conv_layer_forward.3} parent=5 // pred_fallthru
      _
    %p175 = scmp.le.s32.totalorder 1, %s11
    %p176 = scmp.lt.s32.totalorder %s11, 4
    %p177 = pnand %p175, %p176
    %p178 = pneg %p177
    // Predicated region
    $region29: #{conv_layer_forward.3} parent=5 // pred_check
      _
    $region30: #{conv_layer_forward.3} parent=5 // pred_check_branch
      %180 = sbr.rel (%p177) target = $region32
    $region31: #{conv_layer_forward.3} parent=5 // pred_region
      %s181 = ssub.s32 %s11, 1
      %p182 = scmp.lt.s32.totalorder %s16, 2
      %s183 = scalar_select %p182, %s16, 2
      %s184 = smul.addr %s183, 8
      %s185 = scalar_lea.vmem %s0, %s184
      %p186 = pneg %p37
      %p187 = pneg %p34
      %s188 = smul.u32 8, %s16
      %p189 = scmp.lt.s32.totalorder %s188, 23
      %s190 = scalar_select %p189, %s188, 23
      %s191 = smul.addr %s190, 2
      %s192 = smul.addr %s191, 8
      %s193 = scalar_lea.vmem %s1, %s192
      %p194 = pneg %p63
      %p195 = pneg %p60
      %p196 = pneg %p84
      %p197 = pneg %p81
      %p198 = pneg %p110
      %p199 = pneg %p107
      %p200 = scmp.lt.s32.totalorder %s16, 2
      %s201 = scalar_select %p200, %s16, 2
      %s202 = smul.addr %s201, 8
      %s203 = scalar_lea.vmem %s3, %s202
      %p204 = pneg %p136
      %p205 = pneg %p133
      %p206 = scmp.lt.s32.totalorder %s16, 2
      %s207 = scalar_select %p206, %s16, 2
      %s208 = smul.addr %s207, 2
      %s209 = scalar_lea.vmem %s4, %s208
      %p210 = scmp.lt.s32.totalorder %s16, 2
      %s211 = scalar_select %p210, %s16, 2
      %s212 = smul.addr %s211, 8
      %s213 = scalar_lea.vmem %s0, %s212
      %s214 = smul.u32 8, %s16
      %p215 = scmp.lt.s32.totalorder %s214, 23
      %s216 = scalar_select %p215, %s214, 23
      %s217 = smul.addr %s216, 2
      %s218 = smul.addr %s217, 8
      %s219 = scalar_lea.vmem %s1, %s218
      %s220 = smul.u32 8, %s16
      %p221 = scmp.lt.s32.totalorder %s16, 2
      %s222 = scalar_select %p221, %s16, 2
      %s223 = smul.addr %s222, 8
      %s224 = scalar_lea.vmem %s3, %s223
      %p225 = scmp.lt.s32.totalorder %s16, 2
      %s226 = scalar_select %p225, %s16, 2
      %s227 = smul.addr %s226, 2
      %s228 = scalar_lea.vmem %s4, %s227
      %v229 = vld [vmem:[%s213] sm:$0xff]
      %v230 = vld [vmem:[%s2] sm:$0x1]
      %v231 = vld [vmem:[%s2 + $0x1] sm:$0x1]
      %v232 = vld [vmem:[%s219] sm:$0xff]
      %v233 = vld [vmem:[%s219 + $0x10] sm:$0xff]
      %v234 = vld [vmem:[%s219 + $0x20] sm:$0xff]
      %v235 = vld [vmem:[%s219 + $0x30] sm:$0xff]
      %v236 = vld [vmem:[%s219 + $0x40] sm:$0xff]
      %v237 = vld [vmem:[%s219 + $0x50] sm:$0xff]
      %v238 = vld [vmem:[%s219 + $0x60] sm:$0xff]
      %v239 = vld [vmem:[%s219 + $0x70] sm:$0xff]
      %v241 = vcombine.high %v229, %v229
      %v243 = vunpack.c.l.s4 1966171168
      %v244 = vunpack.c.0.s8 %v243
      %v245 = vlaneseq
      %v246 = vshrl.u32 %v245, 7
      %v247 = vsub.s32 %v244, %v246
      %v248 = vrot.slane %v229, %v247
      %v250 = vunpack.c.l.s4 1966171168
      %v251 = vunpack.c.0.s8 %v250
      %v252 = vlaneseq
      %v253 = vshrl.u32 %v252, 7
      %v254 = vsub.s32 %v251, %v253
      %v255 = vrot.slane %v241, %v254
      %v256 = vcombine.high %v248, %v248
      %v257 = vcombine.high %v255, %v255
      %v259 = vunpack.c.l.s4 1966171168
      %v260 = vunpack.c.0.s8 %v259
      %v261 = vlaneseq
      %v262 = vshrl.u32 %v261, 7
      %v263 = vsub.s32 %v260, %v262
      %v264 = vrot.slane %v248, %v263
      %v266 = vunpack.c.l.s4 1966171168
      %v267 = vunpack.c.0.s8 %v266
      %v268 = vlaneseq
      %v269 = vshrl.u32 %v268, 7
      %v270 = vsub.s32 %v267, %v269
      %v271 = vrot.slane %v255, %v270
      %v273 = vunpack.c.l.s4 1966171168
      %v274 = vunpack.c.0.s8 %v273
      %v275 = vlaneseq
      %v276 = vshrl.u32 %v275, 7
      %v277 = vsub.s32 %v274, %v276
      %v278 = vrot.slane %v256, %v277
      %v280 = vunpack.c.l.s4 1966171168
      %v281 = vunpack.c.0.s8 %v280
      %v282 = vlaneseq
      %v283 = vshrl.u32 %v282, 7
      %v284 = vsub.s32 %v281, %v283
      %v285 = vrot.slane %v257, %v284
      %v286 = vcombine.high %v264, %v264
      %v287 = vcombine.high %v271, %v271
      %v288 = vcombine.high %v278, %v278
      %v289 = vcombine.high %v285, %v285
      %v290 = vlaneseq
      %v291 = vshrl.u32 %v290, 7
      %v292 = vsub.s32 0, %v291
      %v293 = vrot.slane %v264, %v292
      %v294 = vlaneseq
      %v295 = vshrl.u32 %v294, 7
      %v296 = vsub.s32 0, %v295
      %v297 = vrot.slane %v278, %v296
      %v298 = vlaneseq
      %v299 = vshrl.u32 %v298, 7
      %v300 = vsub.s32 0, %v299
      %v301 = vrot.slane %v286, %v300
      %v302 = vlaneseq
      %v303 = vshrl.u32 %v302, 7
      %v304 = vsub.s32 0, %v303
      %v305 = vrot.slane %v288, %v304
      %v306 = vlaneseq
      %v307 = vshrl.u32 %v306, 7
      %v308 = vsub.s32 0, %v307
      %v309 = vrot.slane %v271, %v308
      %v310 = vlaneseq
      %v311 = vshrl.u32 %v310, 7
      %v312 = vsub.s32 0, %v311
      %v313 = vrot.slane %v285, %v312
      %v314 = vlaneseq
      %v315 = vshrl.u32 %v314, 7
      %v316 = vsub.s32 0, %v315
      %v317 = vrot.slane %v287, %v316
      %v318 = vlaneseq
      %v319 = vshrl.u32 %v318, 7
      %v320 = vsub.s32 0, %v319
      %v321 = vrot.slane %v289, %v320
      %v330 = vadd.f32 %v232, %v293
      %v331 = vadd.f32 %v233, %v297
      %v332 = vadd.f32 %v234, %v301
      %v333 = vadd.f32 %v235, %v305
      %v334 = vadd.f32 %v236, %v309
      %v335 = vadd.f32 %v237, %v313
      %v336 = vadd.f32 %v238, %v317
      %v337 = vadd.f32 %v239, %v321
      %v338 = vlaneseq
      %v339 = vshrl.u32 %v338, 7
      %v340 = vsub.s32 0, %v339
      %v341 = vrot.slane %v230, %v340
      %v342 = vmul.f32 %v330, %v341
      %v343 = vmul.f32 %v331, %v341
      %v344 = vmul.f32 %v332, %v341
      %v345 = vmul.f32 %v333, %v341
      %v346 = vmul.f32 %v334, %v341
      %v347 = vmul.f32 %v335, %v341
      %v348 = vmul.f32 %v336, %v341
      %v349 = vmul.f32 %v337, %v341
      %v350 = vlaneseq
      %v351 = vshrl.u32 %v350, 7
      %v352 = vsub.s32 0, %v351
      %v353 = vrot.slane %v231, %v352
      %v354 = vadd.f32 %v342, %v353
      %v355 = vadd.f32 %v343, %v353
      %v356 = vadd.f32 %v344, %v353
      %v357 = vadd.f32 %v345, %v353
      %v358 = vadd.f32 %v346, %v353
      %v359 = vadd.f32 %v347, %v353
      %v360 = vadd.f32 %v348, %v353
      %v361 = vadd.f32 %v349, %v353
      %v362 = vxor.u32 %v354, 2147483648
      %v363 = vxor.u32 %v355, 2147483648
      %v364 = vxor.u32 %v356, 2147483648
      %v365 = vxor.u32 %v357, 2147483648
      %v366 = vxor.u32 %v358, 2147483648
      %v367 = vxor.u32 %v359, 2147483648
      %v368 = vxor.u32 %v360, 2147483648
      %v369 = vxor.u32 %v361, 2147483648
      %v370 = vmul.f32 %v362, 1.442695
      %v371 = vpow.pop %v370
      %v372 = vmul.f32 %v363, 1.442695
      %v373 = vpow.pop %v372
      %v374 = vmul.f32 %v364, 1.442695
      %v375 = vpow.pop %v374
      %v376 = vmul.f32 %v365, 1.442695
      %v377 = vpow.pop %v376
      %v378 = vmul.f32 %v366, 1.442695
      %v379 = vpow.pop %v378
      %v380 = vmul.f32 %v367, 1.442695
      %v381 = vpow.pop %v380
      %v382 = vmul.f32 %v368, 1.442695
      %v383 = vpow.pop %v382
      %v384 = vmul.f32 %v369, 1.442695
      %v385 = vpow.pop %v384
      %v386 = vadd.f32 %v371, 1.0
      %v387 = vadd.f32 %v373, 1.0
      %v388 = vadd.f32 %v375, 1.0
      %v389 = vadd.f32 %v377, 1.0
      %v390 = vadd.f32 %v379, 1.0
      %v391 = vadd.f32 %v381, 1.0
      %v392 = vadd.f32 %v383, 1.0
      %v393 = vadd.f32 %v385, 1.0
      %v394 = vrcp.pop %v386
      %v395 = vmul.f32 1.0, %v394
      %v396 = vrcp.pop %v387
      %v397 = vmul.f32 1.0, %v396
      %v398 = vrcp.pop %v388
      %v399 = vmul.f32 1.0, %v398
      %v400 = vrcp.pop %v389
      %v401 = vmul.f32 1.0, %v400
      %v402 = vrcp.pop %v390
      %v403 = vmul.f32 1.0, %v402
      %v404 = vrcp.pop %v391
      %v405 = vmul.f32 1.0, %v404
      %v406 = vrcp.pop %v392
      %v407 = vmul.f32 1.0, %v406
      %v408 = vrcp.pop %v393
      %v409 = vmul.f32 1.0, %v408
      %v410 = vmax.f32 %v354, 0.0
      %v411 = vmax.f32 %v355, 0.0
      %v412 = vmax.f32 %v356, 0.0
      %v413 = vmax.f32 %v357, 0.0
      %v414 = vmax.f32 %v358, 0.0
      %v415 = vmax.f32 %v359, 0.0
      %v416 = vmax.f32 %v360, 0.0
      %v417 = vmax.f32 %v361, 0.0
      %v418 = vand.u32 2147483647, %v354
      %v419 = vand.u32 2147483647, %v355
      %v420 = vand.u32 2147483647, %v356
      %v421 = vand.u32 2147483647, %v357
      %v422 = vand.u32 2147483647, %v358
      %v423 = vand.u32 2147483647, %v359
      %v424 = vand.u32 2147483647, %v360
      %v425 = vand.u32 2147483647, %v361
      %v426 = vsub.f32 0.0, %v418
      %v427 = vsub.f32 0.0, %v419
      %v428 = vsub.f32 0.0, %v420
      %v429 = vsub.f32 0.0, %v421
      %v430 = vsub.f32 0.0, %v422
      %v431 = vsub.f32 0.0, %v423
      %v432 = vsub.f32 0.0, %v424
      %v433 = vsub.f32 0.0, %v425
      %v434 = vmul.f32 %v426, 1.442695
      %v435 = vpow.pop %v434
      %v436 = vmul.f32 %v427, 1.442695
      %v437 = vpow.pop %v436
      %v438 = vmul.f32 %v428, 1.442695
      %v439 = vpow.pop %v438
      %v440 = vmul.f32 %v429, 1.442695
      %v441 = vpow.pop %v440
      %v442 = vmul.f32 %v430, 1.442695
      %v443 = vpow.pop %v442
      %v444 = vmul.f32 %v431, 1.442695
      %v445 = vpow.pop %v444
      %v446 = vmul.f32 %v432, 1.442695
      %v447 = vpow.pop %v446
      %v448 = vmul.f32 %v433, 1.442695
      %v449 = vpow.pop %v448
      %v450 = vadd.f32 %v435, 1.0
      %v451 = vlog2.pop %v450
      %v452 = vmul.f32 %v451, 0.6931472
      %v453 = vmul.f32 -0.5, %v435
      %v454 = vadd.f32 %v453, 1.0
      %v455 = vmul.f32 %v454, %v435
      %v456 = vand.u32 2147483647, %v435
      %vm457 = vcmp.lt.f32.partialorder %v456, 0.0004427343
      %v458 = vsel %vm457, %v455, %v452
      %v459 = vadd.f32 %v437, 1.0
      %v460 = vlog2.pop %v459
      %v461 = vmul.f32 %v460, 0.6931472
      %v462 = vmul.f32 -0.5, %v437
      %v463 = vadd.f32 %v462, 1.0
      %v464 = vmul.f32 %v463, %v437
      %v465 = vand.u32 2147483647, %v437
      %vm466 = vcmp.lt.f32.partialorder %v465, 0.0004427343
      %v467 = vsel %vm466, %v464, %v461
      %v468 = vadd.f32 %v439, 1.0
      %v469 = vlog2.pop %v468
      %v470 = vmul.f32 %v469, 0.6931472
      %v471 = vmul.f32 -0.5, %v439
      %v472 = vadd.f32 %v471, 1.0
      %v473 = vmul.f32 %v472, %v439
      %v474 = vand.u32 2147483647, %v439
      %vm475 = vcmp.lt.f32.partialorder %v474, 0.0004427343
      %v476 = vsel %vm475, %v473, %v470
      %v477 = vadd.f32 %v441, 1.0
      %v478 = vlog2.pop %v477
      %v479 = vmul.f32 %v478, 0.6931472
      %v480 = vmul.f32 -0.5, %v441
      %v481 = vadd.f32 %v480, 1.0
      %v482 = vmul.f32 %v481, %v441
      %v483 = vand.u32 2147483647, %v441
      %vm484 = vcmp.lt.f32.partialorder %v483, 0.0004427343
      %v485 = vsel %vm484, %v482, %v479
      %v486 = vadd.f32 %v443, 1.0
      %v487 = vlog2.pop %v486
      %v488 = vmul.f32 %v487, 0.6931472
      %v489 = vmul.f32 -0.5, %v443
      %v490 = vadd.f32 %v489, 1.0
      %v491 = vmul.f32 %v490, %v443
      %v492 = vand.u32 2147483647, %v443
      %vm493 = vcmp.lt.f32.partialorder %v492, 0.0004427343
      %v494 = vsel %vm493, %v491, %v488
      %v495 = vadd.f32 %v445, 1.0
      %v496 = vlog2.pop %v495
      %v497 = vmul.f32 %v496, 0.6931472
      %v498 = vmul.f32 -0.5, %v445
      %v499 = vadd.f32 %v498, 1.0
      %v500 = vmul.f32 %v499, %v445
      %v501 = vand.u32 2147483647, %v445
      %vm502 = vcmp.lt.f32.partialorder %v501, 0.0004427343
      %v503 = vsel %vm502, %v500, %v497
      %v504 = vadd.f32 %v447, 1.0
      %v505 = vlog2.pop %v504
      %v506 = vmul.f32 %v505, 0.6931472
      %v507 = vmul.f32 -0.5, %v447
      %v508 = vadd.f32 %v507, 1.0
      %v509 = vmul.f32 %v508, %v447
      %v510 = vand.u32 2147483647, %v447
      %vm511 = vcmp.lt.f32.partialorder %v510, 0.0004427343
      %v512 = vsel %vm511, %v509, %v506
      %v513 = vadd.f32 %v449, 1.0
      %v514 = vlog2.pop %v513
      %v515 = vmul.f32 %v514, 0.6931472
      %v516 = vmul.f32 -0.5, %v449
      %v517 = vadd.f32 %v516, 1.0
      %v518 = vmul.f32 %v517, %v449
      %v519 = vand.u32 2147483647, %v449
      %vm520 = vcmp.lt.f32.partialorder %v519, 0.0004427343
      %v521 = vsel %vm520, %v518, %v515
      %v522 = vadd.f32 %v410, %v458
      %v523 = vadd.f32 %v411, %v467
      %v524 = vadd.f32 %v412, %v476
      %v525 = vadd.f32 %v413, %v485
      %v526 = vadd.f32 %v414, %v494
      %v527 = vadd.f32 %v415, %v503
      %v528 = vadd.f32 %v416, %v512
      %v529 = vadd.f32 %v417, %v521
      %538 = vrot.lane.b32.xlu0 %v522, 96
      %v539 = vpop.permute.xlu0 %538
      %540 = vrot.lane.b32.xlu0 %v523, 96
      %v541 = vpop.permute.xlu0 %540
      %542 = vrot.lane.b32.xlu0 %v524, 96
      %v543 = vpop.permute.xlu0 %542
      %544 = vrot.lane.b32.xlu0 %v525, 96
      %v545 = vpop.permute.xlu0 %544
      %546 = vrot.lane.b32.xlu0 %v526, 96
      %v547 = vpop.permute.xlu0 %546
      %548 = vrot.lane.b32.xlu0 %v527, 96
      %v549 = vpop.permute.xlu0 %548
      %550 = vrot.lane.b32.xlu0 %v528, 96
      %v551 = vpop.permute.xlu0 %550
      %552 = vrot.lane.b32.xlu0 %v529, 96
      %v553 = vpop.permute.xlu0 %552
      %v562 = vmul.f32 %v395, %v539
      %v563 = vmul.f32 %v397, %v541
      %v564 = vmul.f32 %v399, %v543
      %v565 = vmul.f32 %v401, %v545
      %v566 = vmul.f32 %v403, %v547
      %v567 = vmul.f32 %v405, %v549
      %v568 = vmul.f32 %v407, %v551
      %v569 = vmul.f32 %v409, %v553
      %vm570 = vcmask 261120
      %v571 = vsel %vm570, %v562, 0.0
      %v572 = vrot.slane %v571, 4
      %v573 = vadd.f32 %v571, %v572
      %v574 = vrot.slane %v573, 2
      %v575 = vadd.f32 %v573, %v574
      %v576 = vrot.slane %v575, 1
      %v577 = vadd.f32 %v575, %v576
      %v578 = vsel %vm570, %v563, 0.0
      %v579 = vrot.slane %v578, 4
      %v580 = vadd.f32 %v578, %v579
      %v581 = vrot.slane %v580, 2
      %v582 = vadd.f32 %v580, %v581
      %v583 = vrot.slane %v582, 1
      %v584 = vadd.f32 %v582, %v583
      %v585 = vsel %vm570, %v564, 0.0
      %v586 = vrot.slane %v585, 4
      %v587 = vadd.f32 %v585, %v586
      %v588 = vrot.slane %v587, 2
      %v589 = vadd.f32 %v587, %v588
      %v590 = vrot.slane %v589, 1
      %v591 = vadd.f32 %v589, %v590
      %v592 = vsel %vm570, %v565, 0.0
      %v593 = vrot.slane %v592, 4
      %v594 = vadd.f32 %v592, %v593
      %v595 = vrot.slane %v594, 2
      %v596 = vadd.f32 %v594, %v595
      %v597 = vrot.slane %v596, 1
      %v598 = vadd.f32 %v596, %v597
      %v599 = vsel %vm570, %v566, 0.0
      %v600 = vrot.slane %v599, 4
      %v601 = vadd.f32 %v599, %v600
      %v602 = vrot.slane %v601, 2
      %v603 = vadd.f32 %v601, %v602
      %v604 = vrot.slane %v603, 1
      %v605 = vadd.f32 %v603, %v604
      %v606 = vsel %vm570, %v567, 0.0
      %v607 = vrot.slane %v606, 4
      %v608 = vadd.f32 %v606, %v607
      %v609 = vrot.slane %v608, 2
      %v610 = vadd.f32 %v608, %v609
      %v611 = vrot.slane %v610, 1
      %v612 = vadd.f32 %v610, %v611
      %v613 = vsel %vm570, %v568, 0.0
      %v614 = vrot.slane %v613, 4
      %v615 = vadd.f32 %v613, %v614
      %v616 = vrot.slane %v615, 2
      %v617 = vadd.f32 %v615, %v616
      %v618 = vrot.slane %v617, 1
      %v619 = vadd.f32 %v617, %v618
      %v620 = vsel %vm570, %v569, 0.0
      %v621 = vrot.slane %v620, 4
      %v622 = vadd.f32 %v620, %v621
      %v623 = vrot.slane %v622, 2
      %v624 = vadd.f32 %v622, %v623
      %v625 = vrot.slane %v624, 1
      %v626 = vadd.f32 %v624, %v625
      %v627 = vadd.f32 %v577, 0.0
      %v628 = vadd.f32 %v584, 0.0
      %v629 = vadd.f32 %v591, 0.0
      %v630 = vadd.f32 %v598, 0.0
      %v631 = vadd.f32 %v605, 0.0
      %v632 = vadd.f32 %v612, 0.0
      %v633 = vadd.f32 %v619, 0.0
      %v634 = vadd.f32 %v626, 0.0
      %v635 = vld [vmem:[%s219 + $0x8] sm:$0xf]
      %v636 = vld [vmem:[%s219 + $0x18] sm:$0xf]
      %v637 = vld [vmem:[%s219 + $0x28] sm:$0xf]
      %v638 = vld [vmem:[%s219 + $0x38] sm:$0xf]
      %v639 = vld [vmem:[%s219 + $0x48] sm:$0xf]
      %v640 = vld [vmem:[%s219 + $0x58] sm:$0xf]
      %v641 = vld [vmem:[%s219 + $0x68] sm:$0xf]
      %v642 = vld [vmem:[%s219 + $0x78] sm:$0xf]
      %v643 = vadd.f32 %v635, %v293
      %v644 = vadd.f32 %v636, %v297
      %v645 = vadd.f32 %v637, %v301
      %v646 = vadd.f32 %v638, %v305
      %v647 = vadd.f32 %v639, %v309
      %v648 = vadd.f32 %v640, %v313
      %v649 = vadd.f32 %v641, %v317
      %v650 = vadd.f32 %v642, %v321
      %v651 = vmul.f32 %v643, %v341
      %v652 = vmul.f32 %v644, %v341
      %v653 = vmul.f32 %v645, %v341
      %v654 = vmul.f32 %v646, %v341
      %v655 = vmul.f32 %v647, %v341
      %v656 = vmul.f32 %v648, %v341
      %v657 = vmul.f32 %v649, %v341
      %v658 = vmul.f32 %v650, %v341
      %v659 = vadd.f32 %v651, %v353
      %v660 = vadd.f32 %v652, %v353
      %v661 = vadd.f32 %v653, %v353
      %v662 = vadd.f32 %v654, %v353
      %v663 = vadd.f32 %v655, %v353
      %v664 = vadd.f32 %v656, %v353
      %v665 = vadd.f32 %v657, %v353
      %v666 = vadd.f32 %v658, %v353
      %v667 = vxor.u32 %v659, 2147483648
      %v668 = vxor.u32 %v660, 2147483648
      %v669 = vxor.u32 %v661, 2147483648
      %v670 = vxor.u32 %v662, 2147483648
      %v671 = vxor.u32 %v663, 2147483648
      %v672 = vxor.u32 %v664, 2147483648
      %v673 = vxor.u32 %v665, 2147483648
      %v674 = vxor.u32 %v666, 2147483648
      %v675 = vmul.f32 %v667, 1.442695
      %v676 = vpow.pop %v675
      %v677 = vmul.f32 %v668, 1.442695
      %v678 = vpow.pop %v677
      %v679 = vmul.f32 %v669, 1.442695
      %v680 = vpow.pop %v679
      %v681 = vmul.f32 %v670, 1.442695
      %v682 = vpow.pop %v681
      %v683 = vmul.f32 %v671, 1.442695
      %v684 = vpow.pop %v683
      %v685 = vmul.f32 %v672, 1.442695
      %v686 = vpow.pop %v685
      %v687 = vmul.f32 %v673, 1.442695
      %v688 = vpow.pop %v687
      %v689 = vmul.f32 %v674, 1.442695
      %v690 = vpow.pop %v689
      %v691 = vadd.f32 %v676, 1.0
      %v692 = vadd.f32 %v678, 1.0
      %v693 = vadd.f32 %v680, 1.0
      %v694 = vadd.f32 %v682, 1.0
      %v695 = vadd.f32 %v684, 1.0
      %v696 = vadd.f32 %v686, 1.0
      %v697 = vadd.f32 %v688, 1.0
      %v698 = vadd.f32 %v690, 1.0
      %v699 = vrcp.pop %v691
      %v700 = vmul.f32 1.0, %v699
      %v701 = vrcp.pop %v692
      %v702 = vmul.f32 1.0, %v701
      %v703 = vrcp.pop %v693
      %v704 = vmul.f32 1.0, %v703
      %v705 = vrcp.pop %v694
      %v706 = vmul.f32 1.0, %v705
      %v707 = vrcp.pop %v695
      %v708 = vmul.f32 1.0, %v707
      %v709 = vrcp.pop %v696
      %v710 = vmul.f32 1.0, %v709
      %v711 = vrcp.pop %v697
      %v712 = vmul.f32 1.0, %v711
      %v713 = vrcp.pop %v698
      %v714 = vmul.f32 1.0, %v713
      %v715 = vmax.f32 %v659, 0.0
      %v716 = vmax.f32 %v660, 0.0
      %v717 = vmax.f32 %v661, 0.0
      %v718 = vmax.f32 %v662, 0.0
      %v719 = vmax.f32 %v663, 0.0
      %v720 = vmax.f32 %v664, 0.0
      %v721 = vmax.f32 %v665, 0.0
      %v722 = vmax.f32 %v666, 0.0
      %v723 = vand.u32 2147483647, %v659
      %v724 = vand.u32 2147483647, %v660
      %v725 = vand.u32 2147483647, %v661
      %v726 = vand.u32 2147483647, %v662
      %v727 = vand.u32 2147483647, %v663
      %v728 = vand.u32 2147483647, %v664
      %v729 = vand.u32 2147483647, %v665
      %v730 = vand.u32 2147483647, %v666
      %v731 = vsub.f32 0.0, %v723
      %v732 = vsub.f32 0.0, %v724
      %v733 = vsub.f32 0.0, %v725
      %v734 = vsub.f32 0.0, %v726
      %v735 = vsub.f32 0.0, %v727
      %v736 = vsub.f32 0.0, %v728
      %v737 = vsub.f32 0.0, %v729
      %v738 = vsub.f32 0.0, %v730
      %v739 = vmul.f32 %v731, 1.442695
      %v740 = vpow.pop %v739
      %v741 = vmul.f32 %v732, 1.442695
      %v742 = vpow.pop %v741
      %v743 = vmul.f32 %v733, 1.442695
      %v744 = vpow.pop %v743
      %v745 = vmul.f32 %v734, 1.442695
      %v746 = vpow.pop %v745
      %v747 = vmul.f32 %v735, 1.442695
      %v748 = vpow.pop %v747
      %v749 = vmul.f32 %v736, 1.442695
      %v750 = vpow.pop %v749
      %v751 = vmul.f32 %v737, 1.442695
      %v752 = vpow.pop %v751
      %v753 = vmul.f32 %v738, 1.442695
      %v754 = vpow.pop %v753
      %v755 = vadd.f32 %v740, 1.0
      %v756 = vlog2.pop %v755
      %v757 = vmul.f32 %v756, 0.6931472
      %v758 = vmul.f32 -0.5, %v740
      %v759 = vadd.f32 %v758, 1.0
      %v760 = vmul.f32 %v759, %v740
      %v761 = vand.u32 2147483647, %v740
      %vm762 = vcmp.lt.f32.partialorder %v761, 0.0004427343
      %v763 = vsel %vm762, %v760, %v757
      %v764 = vadd.f32 %v742, 1.0
      %v765 = vlog2.pop %v764
      %v766 = vmul.f32 %v765, 0.6931472
      %v767 = vmul.f32 -0.5, %v742
      %v768 = vadd.f32 %v767, 1.0
      %v769 = vmul.f32 %v768, %v742
      %v770 = vand.u32 2147483647, %v742
      %vm771 = vcmp.lt.f32.partialorder %v770, 0.0004427343
      %v772 = vsel %vm771, %v769, %v766
      %v773 = vadd.f32 %v744, 1.0
      %v774 = vlog2.pop %v773
      %v775 = vmul.f32 %v774, 0.6931472
      %v776 = vmul.f32 -0.5, %v744
      %v777 = vadd.f32 %v776, 1.0
      %v778 = vmul.f32 %v777, %v744
      %v779 = vand.u32 2147483647, %v744
      %vm780 = vcmp.lt.f32.partialorder %v779, 0.0004427343
      %v781 = vsel %vm780, %v778, %v775
      %v782 = vadd.f32 %v746, 1.0
      %v783 = vlog2.pop %v782
      %v784 = vmul.f32 %v783, 0.6931472
      %v785 = vmul.f32 -0.5, %v746
      %v786 = vadd.f32 %v785, 1.0
      %v787 = vmul.f32 %v786, %v746
      %v788 = vand.u32 2147483647, %v746
      %vm789 = vcmp.lt.f32.partialorder %v788, 0.0004427343
      %v790 = vsel %vm789, %v787, %v784
      %v791 = vadd.f32 %v748, 1.0
      %v792 = vlog2.pop %v791
      %v793 = vmul.f32 %v792, 0.6931472
      %v794 = vmul.f32 -0.5, %v748
      %v795 = vadd.f32 %v794, 1.0
      %v796 = vmul.f32 %v795, %v748
      %v797 = vand.u32 2147483647, %v748
      %vm798 = vcmp.lt.f32.partialorder %v797, 0.0004427343
      %v799 = vsel %vm798, %v796, %v793
      %v800 = vadd.f32 %v750, 1.0
      %v801 = vlog2.pop %v800
      %v802 = vmul.f32 %v801, 0.6931472
      %v803 = vmul.f32 -0.5, %v750
      %v804 = vadd.f32 %v803, 1.0
      %v805 = vmul.f32 %v804, %v750
      %v806 = vand.u32 2147483647, %v750
      %vm807 = vcmp.lt.f32.partialorder %v806, 0.0004427343
      %v808 = vsel %vm807, %v805, %v802
      %v809 = vadd.f32 %v752, 1.0
      %v810 = vlog2.pop %v809
      %v811 = vmul.f32 %v810, 0.6931472
      %v812 = vmul.f32 -0.5, %v752
      %v813 = vadd.f32 %v812, 1.0
      %v814 = vmul.f32 %v813, %v752
      %v815 = vand.u32 2147483647, %v752
      %vm816 = vcmp.lt.f32.partialorder %v815, 0.0004427343
      %v817 = vsel %vm816, %v814, %v811
      %v818 = vadd.f32 %v754, 1.0
      %v819 = vlog2.pop %v818
      %v820 = vmul.f32 %v819, 0.6931472
      %v821 = vmul.f32 -0.5, %v754
      %v822 = vadd.f32 %v821, 1.0
      %v823 = vmul.f32 %v822, %v754
      %v824 = vand.u32 2147483647, %v754
      %vm825 = vcmp.lt.f32.partialorder %v824, 0.0004427343
      %v826 = vsel %vm825, %v823, %v820
      %v827 = vadd.f32 %v715, %v763
      %v828 = vadd.f32 %v716, %v772
      %v829 = vadd.f32 %v717, %v781
      %v830 = vadd.f32 %v718, %v790
      %v831 = vadd.f32 %v719, %v799
      %v832 = vadd.f32 %v720, %v808
      %v833 = vadd.f32 %v721, %v817
      %v834 = vadd.f32 %v722, %v826
      %843 = vrot.lane.b32.xlu0 %v827, 96
      %v844 = vpop.permute.xlu0 %843
      %845 = vrot.lane.b32.xlu0 %v828, 96
      %v846 = vpop.permute.xlu0 %845
      %847 = vrot.lane.b32.xlu0 %v829, 96
      %v848 = vpop.permute.xlu0 %847
      %849 = vrot.lane.b32.xlu0 %v830, 96
      %v850 = vpop.permute.xlu0 %849
      %851 = vrot.lane.b32.xlu0 %v831, 96
      %v852 = vpop.permute.xlu0 %851
      %853 = vrot.lane.b32.xlu0 %v832, 96
      %v854 = vpop.permute.xlu0 %853
      %855 = vrot.lane.b32.xlu0 %v833, 96
      %v856 = vpop.permute.xlu0 %855
      %857 = vrot.lane.b32.xlu0 %v834, 96
      %v858 = vpop.permute.xlu0 %857
      %v867 = vmul.f32 %v700, %v844
      %v868 = vmul.f32 %v702, %v846
      %v869 = vmul.f32 %v704, %v848
      %v870 = vmul.f32 %v706, %v850
      %v871 = vmul.f32 %v708, %v852
      %v872 = vmul.f32 %v710, %v854
      %v873 = vmul.f32 %v712, %v856
      %v874 = vmul.f32 %v714, %v858
      %vm875 = vcmask 257024
      %v876 = vsel %vm875, %v867, 0.0
      %v877 = vrot.slane %v876, 4
      %v878 = vadd.f32 %v876, %v877
      %v879 = vrot.slane %v878, 2
      %v880 = vadd.f32 %v878, %v879
      %v881 = vrot.slane %v880, 1
      %v882 = vadd.f32 %v880, %v881
      %v883 = vsel %vm875, %v868, 0.0
      %v884 = vrot.slane %v883, 4
      %v885 = vadd.f32 %v883, %v884
      %v886 = vrot.slane %v885, 2
      %v887 = vadd.f32 %v885, %v886
      %v888 = vrot.slane %v887, 1
      %v889 = vadd.f32 %v887, %v888
      %v890 = vsel %vm875, %v869, 0.0
      %v891 = vrot.slane %v890, 4
      %v892 = vadd.f32 %v890, %v891
      %v893 = vrot.slane %v892, 2
      %v894 = vadd.f32 %v892, %v893
      %v895 = vrot.slane %v894, 1
      %v896 = vadd.f32 %v894, %v895
      %v897 = vsel %vm875, %v870, 0.0
      %v898 = vrot.slane %v897, 4
      %v899 = vadd.f32 %v897, %v898
      %v900 = vrot.slane %v899, 2
      %v901 = vadd.f32 %v899, %v900
      %v902 = vrot.slane %v901, 1
      %v903 = vadd.f32 %v901, %v902
      %v904 = vsel %vm875, %v871, 0.0
      %v905 = vrot.slane %v904, 4
      %v906 = vadd.f32 %v904, %v905
      %v907 = vrot.slane %v906, 2
      %v908 = vadd.f32 %v906, %v907
      %v909 = vrot.slane %v908, 1
      %v910 = vadd.f32 %v908, %v909
      %v911 = vsel %vm875, %v872, 0.0
      %v912 = vrot.slane %v911, 4
      %v913 = vadd.f32 %v911, %v912
      %v914 = vrot.slane %v913, 2
      %v915 = vadd.f32 %v913, %v914
      %v916 = vrot.slane %v915, 1
      %v917 = vadd.f32 %v915, %v916
      %v918 = vsel %vm875, %v873, 0.0
      %v919 = vrot.slane %v918, 4
      %v920 = vadd.f32 %v918, %v919
      %v921 = vrot.slane %v920, 2
      %v922 = vadd.f32 %v920, %v921
      %v923 = vrot.slane %v922, 1
      %v924 = vadd.f32 %v922, %v923
      %v925 = vsel %vm875, %v874, 0.0
      %v926 = vrot.slane %v925, 4
      %v927 = vadd.f32 %v925, %v926
      %v928 = vrot.slane %v927, 2
      %v929 = vadd.f32 %v927, %v928
      %v930 = vrot.slane %v929, 1
      %v931 = vadd.f32 %v929, %v930
      %v932 = vadd.f32 %v627, %v882
      %v933 = vadd.f32 %v628, %v889
      %v934 = vadd.f32 %v629, %v896
      %v935 = vadd.f32 %v630, %v903
      %v936 = vadd.f32 %v631, %v910
      %v937 = vadd.f32 %v632, %v917
      %v938 = vadd.f32 %v633, %v924
      %v939 = vadd.f32 %v634, %v931
      %vm948 = vcmask 1041409
      %v949 = vsel %vm948, %v933, %v932
      %vm950 = vcmask 1042434
      %v951 = vsel %vm950, %v934, %v949
      %vm952 = vcmask 1043459
      %v953 = vsel %vm952, %v935, %v951
      %vm954 = vcmask 1044484
      %v955 = vsel %vm954, %v936, %v953
      %vm956 = vcmask 1045509
      %v957 = vsel %vm956, %v937, %v955
      %vm958 = vcmask 1046534
      %v959 = vsel %vm958, %v938, %v957
      %vm960 = vcmask 1047559
      %v961 = vsel %vm960, %v939, %v959
      %963 = vst.msk [vmem:[%s224] sm:$0xff] %vm570, %v961
      %s964 = smul.u32 %s16, 8
      %v965 = vlaneseq
      %v966 = vshrl.u32 %v965, 7
      %v967 = vstv %s964
      %v968 = vadd.s32 %v967, %v966
      %vm969 = vcmp.lt.s32.totalorder %v968, 20
      %v970 = vsel %vm969, 1, 0
      %v971 = vcvt.s32.f32 %v970
      %v973 = vrot.slane %v971, 1
      %v974 = vrot.slane %v971, 2
      %v975 = vrot.slane %v971, 3
      %v976 = vrot.slane %v971, 4
      %v977 = vrot.slane %v971, 5
      %v978 = vrot.slane %v971, 6
      %v979 = vrot.slane %v971, 7
      %v988 = vmul.f32 %v932, %v971
      %v989 = vmul.f32 %v933, %v973
      %v990 = vmul.f32 %v934, %v974
      %v991 = vmul.f32 %v935, %v975
      %v992 = vmul.f32 %v936, %v976
      %v993 = vmul.f32 %v937, %v977
      %v994 = vmul.f32 %v938, %v978
      %v995 = vmul.f32 %v939, %v979
      %v1004 = vrot.slane %v989, 7
      %v1005 = vsel %vm948, %v1004, %v988
      %v1006 = vrot.slane %v990, 6
      %v1007 = vsel %vm950, %v1006, %v1005
      %v1008 = vrot.slane %v991, 5
      %v1009 = vsel %vm952, %v1008, %v1007
      %v1010 = vrot.slane %v992, 4
      %v1011 = vsel %vm954, %v1010, %v1009
      %v1012 = vrot.slane %v993, 3
      %v1013 = vsel %vm956, %v1012, %v1011
      %v1014 = vrot.slane %v994, 2
      %v1015 = vsel %vm958, %v1014, %v1013
      %v1016 = vrot.slane %v995, 1
      %v1017 = vsel %vm960, %v1016, %v1015
      %v1019 = vsel %vm570, %v1017, 0.0
      %v1020 = vrot.slane %v1019, 4
      %v1021 = vadd.f32 %v1019, %v1020
      %v1022 = vrot.slane %v1021, 2
      %v1023 = vadd.f32 %v1021, %v1022
      %v1024 = vrot.slane %v1023, 1
      %v1025 = vadd.f32 %v1023, %v1024
      %v1026 = vmul.f32 %v988, %v932
      %v1027 = vmul.f32 %v989, %v933
      %v1028 = vmul.f32 %v990, %v934
      %v1029 = vmul.f32 %v991, %v935
      %v1030 = vmul.f32 %v992, %v936
      %v1031 = vmul.f32 %v993, %v937
      %v1032 = vmul.f32 %v994, %v938
      %v1033 = vmul.f32 %v995, %v939
      %v1042 = vrot.slane %v1027, 7
      %v1043 = vsel %vm948, %v1042, %v1026
      %v1044 = vrot.slane %v1028, 6
      %v1045 = vsel %vm950, %v1044, %v1043
      %v1046 = vrot.slane %v1029, 5
      %v1047 = vsel %vm952, %v1046, %v1045
      %v1048 = vrot.slane %v1030, 4
      %v1049 = vsel %vm954, %v1048, %v1047
      %v1050 = vrot.slane %v1031, 3
      %v1051 = vsel %vm956, %v1050, %v1049
      %v1052 = vrot.slane %v1032, 2
      %v1053 = vsel %vm958, %v1052, %v1051
      %v1054 = vrot.slane %v1033, 1
      %v1055 = vsel %vm960, %v1054, %v1053
      %v1057 = vsel %vm570, %v1055, 0.0
      %v1058 = vrot.slane %v1057, 4
      %v1059 = vadd.f32 %v1057, %v1058
      %v1060 = vrot.slane %v1059, 2
      %v1061 = vadd.f32 %v1059, %v1060
      %v1062 = vrot.slane %v1061, 1
      %v1063 = vadd.f32 %v1061, %v1062
      %v1065 = vrot.slane %v1063, 7
      %vm1067 = vcmask 1040384
      %v1068 = vsel %vm1067, %v1025, %v1065
      %vm1069 = vcmask 254976
      %1070 = vst.msk [vmem:[%s228] sm:$0x3] %vm1069, %v1068
      %p1071 = scmp.lt.s32.totalorder %s16, 2
      %s1072 = scalar_select %p1071, %s16, 2
      %s1073 = smul.addr %s1072, 8
      %s1074 = scalar_lea.vmem %s3, %s1073
      %p1075 = scmp.lt.s32.totalorder %s16, 2
      %s1076 = scalar_select %p1075, %s16, 2
      %s1077 = smul.addr %s1076, 2
      %s1078 = scalar_lea.vmem %s4, %s1077
      // Predicated region
      $region33: #{conv_layer_forward.3} parent=31 // pred_check
        %p1079 = pneg %p107
      $region34: #{conv_layer_forward.3} parent=31 // pred_check_branch
        %1081 = sbr.rel (%p1079) target = $region36
      $region35: #{conv_layer_forward.3} parent=31 // pred_region
        _
      $region36: #{conv_layer_forward.3} parent=31 // pred_fallthru
        _
      // Predicated region
      $region37: #{conv_layer_forward.3} parent=31 // pred_check
        %p1082 = pneg %p133
      $region38: #{conv_layer_forward.3} parent=31 // pred_check_branch
        %1084 = sbr.rel (%p1082) target = $region40
      $region39: #{conv_layer_forward.3} parent=31 // pred_region
        _
      $region40: #{conv_layer_forward.3} parent=31 // pred_fallthru
        _
    $region32: #{conv_layer_forward.3} parent=5 // pred_fallthru
      _
    %p1085 = scmp.le.s32.totalorder 2, %s11
    // Predicated region
    $region41: #{conv_layer_forward.3} parent=5 // pred_check
      %p1086 = pneg %p1085
    $region42: #{conv_layer_forward.3} parent=5 // pred_check_branch
      %1088 = sbr.rel (%p1086) target = $region44
    $region43: #{conv_layer_forward.3} parent=5 // pred_region
      %s1089 = ssub.s32 %s11, 2
      // Predicated region
      $region45: #{conv_layer_forward.3} parent=43 // pred_check
        %p1090 = pneg %p113
      $region46: #{conv_layer_forward.3} parent=43 // pred_check_branch
        %1092 = sbr.rel (%p1090) target = $region48
      $region47: #{conv_layer_forward.3} parent=43 // pred_region
        %p1093 = scmp.lt.s32.totalorder %s17, 2
        %s1094 = scalar_select %p1093, %s17, 2
        %s1095 = smul.addr %s1094, 8
        %s1096 = scalar_lea.vmem %s3, %s1095
      $region48: #{conv_layer_forward.3} parent=43 // pred_fallthru
        _
      // Predicated region
      $region49: #{conv_layer_forward.3} parent=43 // pred_check
        %p1097 = pneg %p139
      $region50: #{conv_layer_forward.3} parent=43 // pred_check_branch
        %1099 = sbr.rel (%p1097) target = $region52
      $region51: #{conv_layer_forward.3} parent=43 // pred_region
        %p1100 = scmp.lt.s32.totalorder %s17, 2
        %s1101 = scalar_select %p1100, %s17, 2
        %s1102 = smul.addr %s1101, 2
        %s1103 = scalar_lea.vmem %s4, %s1102
      $region52: #{conv_layer_forward.3} parent=43 // pred_fallthru
        _
    $region44: #{conv_layer_forward.3} parent=5 // pred_fallthru
      _
  $region6: #{conv_layer_forward.3} parent=0 // loop_footer
    %s15 = sadd.s32 1, %s11
  $region7: #{conv_layer_forward.3} parent=0 // loop_footer_branch
    %10 = sbr.rel target = $region3
  $region8: #{conv_layer_forward.3} parent=0 // loop_exit
    _

</llo_original>
